<compile_context>
chip_gen: v7x
topology: tpu7x:2x2x1
jax: 0.10.0
libtpu: 0.0.40
codegen_flags: <defaults>
</compile_context>

<pallas_src>
import math

import jax
import jax.numpy as jnp
from jax import lax
from jax.experimental import pallas as pl
from jax.experimental.pallas import tpu as pltpu


def _pick_row_tile(h):
    """Largest divisor of h that is <= 8 (=> up to 16 output rows per step)."""
    for ts in range(min(8, h), 0, -1):
        if h % ts == 0:
            return ts
    return 1


# ---------------------------------------------------------------------------
# Kernel 1: fused nearest-x2 upsample + 3x3 conv (stride 1, pad 1).
#   x_ref : (1, H, W, C)        whole source image of the current batch elem
#   w_ref : (2, 9*C, 2*C)       collapsed weights; dim0=di, rows=(r,s,cin),
#                               cols=(dj,cout)
#   b_ref : (2, 1, 2*C)         bias tiled over dj, per di
#   o_ref : (1, TS, 2, W, 2*C)  [i, di, j, (dj, c)] for the current row tile
#   xp_ref: (TS+2, W+2, C)      zero-padded source rows needed by this tile
# ---------------------------------------------------------------------------
def _make_fused_upconv_kernel(H, W, C, TS, T):
    TWO_C = 2 * C

    def kernel(x_ref, w_ref, b_ref, o_ref, xp_ref):
        t = pl.program_id(1)
        dt = xp_ref.dtype

        # ---- build the 1-padded source slab for this row tile in VMEM -----
        # Zero only the border pieces (left/right columns every step; top /
        # bottom halo rows only at the image edges) instead of the full slab.
        zcol = jnp.zeros((TS + 2, 1, C), dt)
        xp_ref[:, 0:1, :] = zcol
        xp_ref[:, W + 1:W + 2, :] = zcol
        xp_ref[1:TS + 1, 1:W + 1, :] = x_ref[0, pl.ds(t * TS, TS), :, :]

        zrow = jnp.zeros((1, W, C), dt)

        @pl.when(t == 0)                   # top halo row is outside the image
        def _():
            xp_ref[0:1, 1:W + 1, :] = zrow

        @pl.when(t > 0)                    # top halo row = source row t*TS - 1
        def _():
            xp_ref[0:1, 1:W + 1, :] = x_ref[0, pl.ds(t * TS - 1, 1), :, :]

        @pl.when(t == T - 1)               # bottom halo row outside the image
        def _():
            xp_ref[TS + 1:TS + 2, 1:W + 1, :] = zrow

        @pl.when(t < T - 1)                # bottom halo row = source row (t+1)*TS
        def _():
            xp_ref[TS + 1:TS + 2, 1:W + 1, :] = x_ref[0, pl.ds((t + 1) * TS, 1), :, :]

        # ---- im2col over the 3x3 window anchored at every source pixel ----
        xp = xp_ref[...]                                        # (TS+2, W+2, C)
        taps = []
        for r in range(3):
            for s in range(3):
                taps.append(xp[r:r + TS, s:s + W, :].reshape(TS * W, C))
        patches = jnp.concatenate(taps, axis=-1)                # (TS*W, 9C)

        # Two MXU matmuls, one per output sub-row di.  The di split lives in
        # the weight layout, so no lane-slicing of the result is needed and
        # each store is a direct write of a (TS, W, 2C)-shaped plane.
        acc0 = jnp.dot(patches, w_ref[0],
                       preferred_element_type=jnp.float32) + b_ref[0]
        acc1 = jnp.dot(patches, w_ref[1],
                       preferred_element_type=jnp.float32) + b_ref[1]

        o_ref[0:1, :, 0:1, :, :] = acc0.astype(o_ref.dtype).reshape(1, TS, 1, W, TWO_C)
        o_ref[0:1, :, 1:2, :, :] = acc1.astype(o_ref.dtype).reshape(1, TS, 1, W, TWO_C)

    return kernel


# ---------------------------------------------------------------------------
# Kernel 2: nearest-x2 upsample only (with_conv=False) -- writes the
# interleave-ready layout directly; no replicas, no XLA transpose glue.
# ---------------------------------------------------------------------------
def _make_nearest_kernel(TS, W, C):
    def kernel(x_ref, o_ref):
        xt = x_ref[0]                                           # (TS, W, C)
        rep = jnp.concatenate([xt, xt], axis=-1)                # (TS, W, 2C): (dj, c)
        rep = rep.reshape(1, TS, 1, W, 2 * C)
        o_ref[0:1, :, 0:1, :, :] = rep                          # di = 0 rows
        o_ref[0:1, :, 1:2, :, :] = rep                          # di = 1 rows
    return kernel


class UpsamplePallas:
    """Pallas mirror of the PyTorch Upsample module (nearest x2, optional conv)."""

    def __init__(self, in_channels, with_conv, key):
        self.with_conv = with_conv
        self.in_channels = in_channels
        if with_conv:
            kw_, kb_ = jax.random.split(key)
            c = in_channels
            bound = 1.0 / math.sqrt(c * 3 * 3)
            # PyTorch Conv2d layout (Cout, Cin, kh, kw) and default init.
            self.w_oihw = jax.random.uniform(kw_, (c, c, 3, 3), jnp.float32,
                                             -bound, bound)
            self.bias = jax.random.uniform(kb_, (c,), jnp.float32, -bound, bound)

            # Fold the nearest-x2 upsample into the conv weights: for output
            # sub-pixel offset d (row or col), original tap k lands on padded
            # 3x3-window position p according to sel[d, p, k].
            m0 = jnp.array([[1., 0., 0.], [0., 1., 1.], [0., 0., 0.]], jnp.float32)
            m1 = jnp.array([[0., 0., 0.], [1., 1., 0.], [0., 0., 1.]], jnp.float32)
            sel = jnp.stack([m0, m1])                            # (2, 3, 3) = [d, p, k]
            w_hwio = jnp.transpose(self.w_oihw, (2, 3, 1, 0))    # (kh, kw, cin, cout)
            wcat = jnp.einsum('ark,bsl,klio->rsiabo', sel, sel, w_hwio)
            # (r, s, cin, di, dj, cout) -> (di, 9*cin, 2*cout): one weight slab
            # per output sub-row, columns ordered (dj, cout).
            self.w_cat = jnp.transpose(wcat, (3, 0, 1, 2, 4, 5)).reshape(2, 9 * c, 2 * c)
            self.b_cat = jnp.tile(self.bias, (2, 1, 2))          # (2, 1, 2*c), f32

    # ---- fused upsample + conv --------------------------------------------
    def _conv_pallas(self, x_nhwc):
        n, h, w, c = x_nhwc.shape
        ts = _pick_row_tile(h)
        t_steps = h // ts
        w_cat = self.w_cat.astype(x_nhwc.dtype)   # bf16-friendly; f32 accumulate
        b_cat = self.b_cat                         # f32, added post-accumulation
        itemsize = jnp.dtype(x_nhwc.dtype).itemsize
        cost = pl.CostEstimate(
            flops=2 * n * h * w * (9 * c) * (4 * c),
            transcendentals=0,
            bytes_accessed=(n * h * w * c + 2 * (9 * c) * (2 * c)
                            + n * h * 2 * w * 2 * c) * itemsize + 2 * 2 * c * 4,
        )
        kernel = _make_fused_upconv_kernel(h, w, c, ts, t_steps)
        return pl.pallas_call(
            kernel,
            out_shape=jax.ShapeDtypeStruct((n, h, 2, w, 2 * c), x_nhwc.dtype),
            grid=(n, t_steps),
            in_specs=[
                # TODO(synk): for very large H*W*C (v7x: 64 MiB VMEM) row-tile x
                # with a manual-DMA halo instead of keeping the image resident.
                pl.BlockSpec((1, h, w, c), lambda ni, ti: (ni, 0, 0, 0)),
                pl.BlockSpec((2, 9 * c, 2 * c), lambda ni, ti: (0, 0, 0)),
                pl.BlockSpec((2, 1, 2 * c), lambda ni, ti: (0, 0, 0)),
            ],
            out_specs=pl.BlockSpec((1, ts, 2, w, 2 * c),
                                   lambda ni, ti: (ni, ti, 0, 0, 0)),
            scratch_shapes=[pltpu.VMEM((ts + 2, w + 2, c), x_nhwc.dtype)],
            compiler_params=pltpu.CompilerParams(
                dimension_semantics=("parallel", "parallel")),
            cost_estimate=cost,
        )(x_nhwc, w_cat, b_cat)

    # ---- upsample only ------------------------------------------------------
    def _nearest_pallas(self, x_nhwc):
        n, h, w, c = x_nhwc.shape
        ts = _pick_row_tile(h)
        t_steps = h // ts
        kernel = _make_nearest_kernel(ts, w, c)
        return pl.pallas_call(
            kernel,
            out_shape=jax.ShapeDtypeStruct((n, h, 2, w, 2 * c), x_nhwc.dtype),
            grid=(n, t_steps),
            in_specs=[pl.BlockSpec((1, ts, w, c), lambda ni, ti: (ni, ti, 0, 0))],
            out_specs=pl.BlockSpec((1, ts, 2, w, 2 * c),
                                   lambda ni, ti: (ni, ti, 0, 0, 0)),
            compiler_params=pltpu.CompilerParams(
                dimension_semantics=("parallel", "parallel")),
        )(x_nhwc)

    def __call__(self, x_nchw):
        n, c, h, w = x_nchw.shape
        x_nhwc = jnp.transpose(x_nchw, (0, 2, 3, 1))
        if self.with_conv:
            out6 = self._conv_pallas(x_nhwc)
        else:
            out6 = self._nearest_pallas(x_nhwc)
        # (N, H, 2, W, 2*C) -> (N, 2H, 2W, C): row-major compatible => free reshape.
        out_nhwc = out6.reshape(n, 2 * h, 2 * w, c)
        return jnp.transpose(out_nhwc, (0, 3, 1, 2))             # back to NCHW


if __name__ == "__main__":
    key = jax.random.PRNGKey(0)
    kx, kp = jax.random.split(key)
    N, C, H, W = 2, 4, 16, 16
    x = jax.random.normal(kx, (N, C, H, W), jnp.float32)

    # ---- with_conv=True ----
    mod = UpsamplePallas(C, with_conv=True, key=kp)
    y = jax.block_until_ready(mod(x))
    assert y.shape == (N, C, 2 * H, 2 * W)
    assert y.dtype == x.dtype

    # pure-JAX reference (NCHW, PyTorch semantics)
    up_ref = jnp.repeat(jnp.repeat(x, 2, axis=2), 2, axis=3)
    y_ref = lax.conv_general_dilated(
        up_ref, mod.w_oihw, window_strides=(1, 1),
        padding=((1, 1), (1, 1)),
        dimension_numbers=("NCHW", "OIHW", "NCHW"))
    y_ref = y_ref + mod.bias[None, :, None, None]
    assert jnp.allclose(y, y_ref, atol=1e-4, rtol=1e-4), "conv mismatch"

    # ---- with_conv=False ----
    mod2 = UpsamplePallas(C, with_conv=False, key=kp)
    y2 = jax.block_until_ready(mod2(x))
    assert y2.shape == (N, C, 2 * H, 2 * W)
    assert jnp.allclose(y2, up_ref, atol=1e-6), "upsample mismatch"

    print("KERNEL_OK")
</pallas_src>

<mosaic_0001>
module attributes {stable_mosaic.version = 11 : i64} {
  func.func @kernel(%arg0: i32, %arg1: i32, %arg2: memref<1x16x16x4xf32, #tpu.memory_space<vmem>>, %arg3: memref<2x36x8xf32, #tpu.memory_space<vmem>>, %arg4: memref<2x1x8xf32, #tpu.memory_space<vmem>>, %arg5: memref<1x8x2x16x8xf32, #tpu.memory_space<vmem>>, %arg6: memref<10x18x4xf32, #tpu.memory_space<vmem>>) attributes {dimension_semantics = [#tpu.dimension_semantics<parallel>, #tpu.dimension_semantics<parallel>], iteration_bounds = array<i64: 2, 2>, scalar_prefetch = 0 : i64, scratch_operands = 1 : i64, tpu.core_type = #tpu.core_type<tc>, window_params = [{transform_indices = @transform_0, window_bounds = array<i64: 1, 16, 16, 4>}, {pipeline_mode = #tpu.pipeline_mode<synchronous>, transform_indices = @transform_1, window_bounds = array<i64: 2, 36, 8>}, {pipeline_mode = #tpu.pipeline_mode<synchronous>, transform_indices = @transform_2, window_bounds = array<i64: 2, 1, 8>}, {transform_indices = @transform_3, window_bounds = array<i64: 1, 8, 2, 16, 8>}]} {
    %cst = arith.constant 0.000000e+00 : f32
    %0 = vector.broadcast %cst : f32 to vector<10x1x4xf32>
    %c0 = arith.constant 0 : index
    %c0_0 = arith.constant 0 : index
    %c0_1 = arith.constant 0 : index
    %1 = vector.load %arg6[%c0, %c0_0, %c0_1] : memref<10x18x4xf32, #tpu.memory_space<vmem>>, vector<10x1x4xf32>
    tpu.vector_store %arg6[%c0, %c0_0, %c0_1], %0 {strides = array<i32>} : memref<10x18x4xf32, #tpu.memory_space<vmem>>, vector<10x1x4xf32>,
    %c0_2 = arith.constant 0 : index
    %c17 = arith.constant 17 : index
    %c0_3 = arith.constant 0 : index
    %2 = vector.load %arg6[%c0_2, %c17, %c0_3] : memref<10x18x4xf32, #tpu.memory_space<vmem>>, vector<10x1x4xf32>
    tpu.vector_store %arg6[%c0_2, %c17, %c0_3], %0 {strides = array<i32>} : memref<10x18x4xf32, #tpu.memory_space<vmem>>, vector<10x1x4xf32>,
    %c8_i32 = arith.constant 8 : i32
    %3 = arith.muli %arg1, %c8_i32 : i32
    %c0_4 = arith.constant 0 : index
    %4 = arith.index_cast %3 : i32 to index
    %c0_5 = arith.constant 0 : index
    %c0_6 = arith.constant 0 : index
    %5 = vector.load %arg2[%c0_4, %4, %c0_5, %c0_6] : memref<1x16x16x4xf32, #tpu.memory_space<vmem>>, vector<1x8x16x4xf32>
    %6 = vector.shape_cast %5 : vector<1x8x16x4xf32> to vector<8x16x4xf32>
    %c1 = arith.constant 1 : index
    %c1_7 = arith.constant 1 : index
    %c0_8 = arith.constant 0 : index
    %7 = vector.load %arg6[%c1, %c1_7, %c0_8] : memref<10x18x4xf32, #tpu.memory_space<vmem>>, vector<8x16x4xf32>
    tpu.vector_store %arg6[%c1, %c1_7, %c0_8], %6 {strides = array<i32>} : memref<10x18x4xf32, #tpu.memory_space<vmem>>, vector<8x16x4xf32>,
    %cst_9 = arith.constant 0.000000e+00 : f32
    %8 = vector.broadcast %cst_9 : f32 to vector<1x16x4xf32>
    %c0_i32 = arith.constant 0 : i32
    %9 = arith.cmpi eq, %arg1, %c0_i32 : i32
    %10 = arith.extui %9 : i1 to i32
    %c0_i32_10 = arith.constant 0 : i32
    %11 = arith.cmpi ne, %10, %c0_i32_10 : i32
    scf.if %11 {
      %c0_43 = arith.constant 0 : index
      %c1_44 = arith.constant 1 : index
      %c0_45 = arith.constant 0 : index
      %59 = vector.load %arg6[%c0_43, %c1_44, %c0_45] : memref<10x18x4xf32, #tpu.memory_space<vmem>>, vector<1x16x4xf32>
      tpu.vector_store %arg6[%c0_43, %c1_44, %c0_45], %8 {strides = array<i32>} : memref<10x18x4xf32, #tpu.memory_space<vmem>>, vector<1x16x4xf32>,
    } else {
    }
    %c0_i32_11 = arith.constant 0 : i32
    %12 = arith.cmpi sgt, %arg1, %c0_i32_11 : i32
    %13 = arith.extui %12 : i1 to i32
    %c0_i32_12 = arith.constant 0 : i32
    %14 = arith.cmpi ne, %13, %c0_i32_12 : i32
    scf.if %14 {
      %c8_i32_43 = arith.constant 8 : i32
      %59 = arith.muli %arg1, %c8_i32_43 : i32
      %c1_i32_44 = arith.constant 1 : i32
      %60 = arith.subi %59, %c1_i32_44 : i32
      %c0_45 = arith.constant 0 : index
      %61 = arith.index_cast %60 : i32 to index
      %c0_46 = arith.constant 0 : index
      %c0_47 = arith.constant 0 : index
      %62 = vector.load %arg2[%c0_45, %61, %c0_46, %c0_47] : memref<1x16x16x4xf32, #tpu.memory_space<vmem>>, vector<1x1x16x4xf32>
      %63 = vector.shape_cast %62 : vector<1x1x16x4xf32> to vector<1x16x4xf32>
      %c0_48 = arith.constant 0 : index
      %c1_49 = arith.constant 1 : index
      %c0_50 = arith.constant 0 : index
      %64 = vector.load %arg6[%c0_48, %c1_49, %c0_50] : memref<10x18x4xf32, #tpu.memory_space<vmem>>, vector<1x16x4xf32>
      tpu.vector_store %arg6[%c0_48, %c1_49, %c0_50], %63 {strides = array<i32>} : memref<10x18x4xf32, #tpu.memory_space<vmem>>, vector<1x16x4xf32>,
    } else {
    }
    %c1_i32 = arith.constant 1 : i32
    %15 = arith.cmpi eq, %arg1, %c1_i32 : i32
    %16 = arith.extui %15 : i1 to i32
    %c0_i32_13 = arith.constant 0 : i32
    %17 = arith.cmpi ne, %16, %c0_i32_13 : i32
    scf.if %17 {
      %c9 = arith.constant 9 : index
      %c1_43 = arith.constant 1 : index
      %c0_44 = arith.constant 0 : index
      %59 = vector.load %arg6[%c9, %c1_43, %c0_44] : memref<10x18x4xf32, #tpu.memory_space<vmem>>, vector<1x16x4xf32>
      tpu.vector_store %arg6[%c9, %c1_43, %c0_44], %8 {strides = array<i32>} : memref<10x18x4xf32, #tpu.memory_space<vmem>>, vector<1x16x4xf32>,
    } else {
    }
    %c1_i32_14 = arith.constant 1 : i32
    %18 = arith.cmpi slt, %arg1, %c1_i32_14 : i32
    %19 = arith.extui %18 : i1 to i32
    %c0_i32_15 = arith.constant 0 : i32
    %20 = arith.cmpi ne, %19, %c0_i32_15 : i32
    scf.if %20 {
      %c1_i32_43 = arith.constant 1 : i32
      %59 = arith.addi %arg1, %c1_i32_43 : i32
      %c8_i32_44 = arith.constant 8 : i32
      %60 = arith.muli %59, %c8_i32_44 : i32
      %c0_45 = arith.constant 0 : index
      %61 = arith.index_cast %60 : i32 to index
      %c0_46 = arith.constant 0 : index
      %c0_47 = arith.constant 0 : index
      %62 = vector.load %arg2[%c0_45, %61, %c0_46, %c0_47] : memref<1x16x16x4xf32, #tpu.memory_space<vmem>>, vector<1x1x16x4xf32>
      %63 = vector.shape_cast %62 : vector<1x1x16x4xf32> to vector<1x16x4xf32>
      %c9 = arith.constant 9 : index
      %c1_48 = arith.constant 1 : index
      %c0_49 = arith.constant 0 : index
      %64 = vector.load %arg6[%c9, %c1_48, %c0_49] : memref<10x18x4xf32, #tpu.memory_space<vmem>>, vector<1x16x4xf32>
      tpu.vector_store %arg6[%c9, %c1_48, %c0_49], %63 {strides = array<i32>} : memref<10x18x4xf32, #tpu.memory_space<vmem>>, vector<1x16x4xf32>,
    } else {
    }
    %c0_16 = arith.constant 0 : index
    %c0_17 = arith.constant 0 : index
    %c0_18 = arith.constant 0 : index
    %21 = vector.load %arg6[%c0_16, %c0_17, %c0_18] : memref<10x18x4xf32, #tpu.memory_space<vmem>>, vector<10x18x4xf32>
    %22 = vector.extract_strided_slice %21 {offsets = [0, 0, 0], sizes = [8, 16, 4], strides = [1, 1, 1]} : vector<10x18x4xf32> to vector<8x16x4xf32>
    %23 = vector.shape_cast %22 : vector<8x16x4xf32> to vector<128x4xf32>
    %24 = vector.extract_strided_slice %21 {offsets = [0, 1, 0], sizes = [8, 16, 4], strides = [1, 1, 1]} : vector<10x18x4xf32> to vector<8x16x4xf32>
    %25 = vector.shape_cast %24 : vector<8x16x4xf32> to vector<128x4xf32>
    %26 = vector.extract_strided_slice %21 {offsets = [0, 2, 0], sizes = [8, 16, 4], strides = [1, 1, 1]} : vector<10x18x4xf32> to vector<8x16x4xf32>
    %27 = vector.shape_cast %26 : vector<8x16x4xf32> to vector<128x4xf32>
    %28 = vector.extract_strided_slice %21 {offsets = [1, 0, 0], sizes = [8, 16, 4], strides = [1, 1, 1]} : vector<10x18x4xf32> to vector<8x16x4xf32>
    %29 = vector.shape_cast %28 : vector<8x16x4xf32> to vector<128x4xf32>
    %30 = vector.extract_strided_slice %21 {offsets = [1, 1, 0], sizes = [8, 16, 4], strides = [1, 1, 1]} : vector<10x18x4xf32> to vector<8x16x4xf32>
    %31 = vector.shape_cast %30 : vector<8x16x4xf32> to vector<128x4xf32>
    %32 = vector.extract_strided_slice %21 {offsets = [1, 2, 0], sizes = [8, 16, 4], strides = [1, 1, 1]} : vector<10x18x4xf32> to vector<8x16x4xf32>
    %33 = vector.shape_cast %32 : vector<8x16x4xf32> to vector<128x4xf32>
    %34 = vector.extract_strided_slice %21 {offsets = [2, 0, 0], sizes = [8, 16, 4], strides = [1, 1, 1]} : vector<10x18x4xf32> to vector<8x16x4xf32>
    %35 = vector.shape_cast %34 : vector<8x16x4xf32> to vector<128x4xf32>
    %36 = vector.extract_strided_slice %21 {offsets = [2, 1, 0], sizes = [8, 16, 4], strides = [1, 1, 1]} : vector<10x18x4xf32> to vector<8x16x4xf32>
    %37 = vector.shape_cast %36 : vector<8x16x4xf32> to vector<128x4xf32>
    %38 = vector.extract_strided_slice %21 {offsets = [2, 2, 0], sizes = [8, 16, 4], strides = [1, 1, 1]} : vector<10x18x4xf32> to vector<8x16x4xf32>
    %39 = vector.shape_cast %38 : vector<8x16x4xf32> to vector<128x4xf32>
    %40 = tpu.concatenate %23, %25, %27, %29, %31, %33, %35, %37, %39 in 1 : vector<128x4xf32>, vector<128x4xf32>, vector<128x4xf32>, vector<128x4xf32>, vector<128x4xf32>, vector<128x4xf32>, vector<128x4xf32>, vector<128x4xf32>, vector<128x4xf32> -> vector<128x36xf32>
    %c0_19 = arith.constant 0 : index
    %c0_20 = arith.constant 0 : index
    %c0_21 = arith.constant 0 : index
    %41 = vector.load %arg3[%c0_19, %c0_20, %c0_21] : memref<2x36x8xf32, #tpu.memory_space<vmem>>, vector<1x36x8xf32>
    %42 = vector.shape_cast %41 : vector<1x36x8xf32> to vector<36x8xf32>
    %cst_22 = arith.constant dense<0.000000e+00> : vector<128x8xf32>
    %43 = tpu.matmul %40, %42, %cst_22 {dimension_numbers = #tpu.dot_dimension_numbers<[1], [0], [0], [1], [0, 0, 1, 1], [], []>} : vector<128x36xf32>, vector<36x8xf32>, vector<128x8xf32> -> vector<128x8xf32>
    %c0_23 = arith.constant 0 : index
    %c0_24 = arith.constant 0 : index
    %c0_25 = arith.constant 0 : index
    %44 = vector.load %arg4[%c0_23, %c0_24, %c0_25] : memref<2x1x8xf32, #tpu.memory_space<vmem>>, vector<1x1x8xf32>
    %45 = vector.shape_cast %44 : vector<1x1x8xf32> to vector<1x8xf32>
    %46 = vector.broadcast %45 : vector<1x8xf32> to vector<128x8xf32>
    %47 = arith.addf %43, %46 : vector<128x8xf32>
    %c1_26 = arith.constant 1 : index
    %c0_27 = arith.constant 0 : index
    %c0_28 = arith.constant 0 : index
    %48 = vector.load %arg3[%c1_26, %c0_27, %c0_28] : memref<2x36x8xf32, #tpu.memory_space<vmem>>, vector<1x36x8xf32>
    %49 = vector.shape_cast %48 : vector<1x36x8xf32> to vector<36x8xf32>
    %cst_29 = arith.constant dense<0.000000e+00> : vector<128x8xf32>
    %50 = tpu.matmul %40, %49, %cst_29 {dimension_numbers = #tpu.dot_dimension_numbers<[1], [0], [0], [1], [0, 0, 1, 1], [], []>} : vector<128x36xf32>, vector<36x8xf32>, vector<128x8xf32> -> vector<128x8xf32>
    %c1_30 = arith.constant 1 : index
    %c0_31 = arith.constant 0 : index
    %c0_32 = arith.constant 0 : index
    %51 = vector.load %arg4[%c1_30, %c0_31, %c0_32] : memref<2x1x8xf32, #tpu.memory_space<vmem>>, vector<1x1x8xf32>
    %52 = vector.shape_cast %51 : vector<1x1x8xf32> to vector<1x8xf32>
    %53 = vector.broadcast %52 : vector<1x8xf32> to vector<128x8xf32>
    %54 = arith.addf %50, %53 : vector<128x8xf32>
    %55 = vector.shape_cast %47 : vector<128x8xf32> to vector<1x8x1x16x8xf32>
    %c0_33 = arith.constant 0 : index
    %c0_34 = arith.constant 0 : index
    %c0_35 = arith.constant 0 : index
    %c0_36 = arith.constant 0 : index
    %c0_37 = arith.constant 0 : index
    %56 = vector.load %arg5[%c0_33, %c0_34, %c0_35, %c0_36, %c0_37] : memref<1x8x2x16x8xf32, #tpu.memory_space<vmem>>, vector<1x8x1x16x8xf32>
    tpu.vector_store %arg5[%c0_33, %c0_34, %c0_35, %c0_36, %c0_37], %55 {strides = array<i32>} : memref<1x8x2x16x8xf32, #tpu.memory_space<vmem>>, vector<1x8x1x16x8xf32>,
    %57 = vector.shape_cast %54 : vector<128x8xf32> to vector<1x8x1x16x8xf32>
    %c0_38 = arith.constant 0 : index
    %c0_39 = arith.constant 0 : index
    %c1_40 = arith.constant 1 : index
    %c0_41 = arith.constant 0 : index
    %c0_42 = arith.constant 0 : index
    %58 = vector.load %arg5[%c0_38, %c0_39, %c1_40, %c0_41, %c0_42] : memref<1x8x2x16x8xf32, #tpu.memory_space<vmem>>, vector<1x8x1x16x8xf32>
    tpu.vector_store %arg5[%c0_38, %c0_39, %c1_40, %c0_41, %c0_42], %57 {strides = array<i32>} : memref<1x8x2x16x8xf32, #tpu.memory_space<vmem>>, vector<1x8x1x16x8xf32>,
    return
  }
  func.func @transform_0(%arg0: i32, %arg1: i32) -> (i32, i32, i32, i32) {
    %c0_i32 = arith.constant 0 : i32
    %c0_i32_0 = arith.constant 0 : i32
    %c0_i32_1 = arith.constant 0 : i32
    %c0_i32_2 = arith.constant 0 : i32
    return %arg0, %c0_i32, %c0_i32_0, %c0_i32_1 : i32, i32, i32, i32
  }
  func.func @transform_1(%arg0: i32, %arg1: i32) -> (i32, i32, i32) {
    %c0_i32 = arith.constant 0 : i32
    %c0_i32_0 = arith.constant 0 : i32
    %c0_i32_1 = arith.constant 0 : i32
    %c0_i32_2 = arith.constant 0 : i32
    return %c0_i32, %c0_i32_0, %c0_i32_1 : i32, i32, i32
  }
  func.func @transform_2(%arg0: i32, %arg1: i32) -> (i32, i32, i32) {
    %c0_i32 = arith.constant 0 : i32
    %c0_i32_0 = arith.constant 0 : i32
    %c0_i32_1 = arith.constant 0 : i32
    %c0_i32_2 = arith.constant 0 : i32
    return %c0_i32, %c0_i32_0, %c0_i32_1 : i32, i32, i32
  }
  func.func @transform_3(%arg0: i32, %arg1: i32) -> (i32, i32, i32, i32, i32) {
    %c0_i32 = arith.constant 0 : i32
    %c0_i32_0 = arith.constant 0 : i32
    %c0_i32_1 = arith.constant 0 : i32
    %c0_i32_2 = arith.constant 0 : i32
    return %arg0, %arg1, %c0_i32, %c0_i32_0, %c0_i32_1 : i32, i32, i32, i32, i32
  }
}

</mosaic_0001>

<llo_original>
// kernel: tpu_custom_call.1
$region0: #{tpu_custom_call.1}
  #allocation0 [shape = 'u32[]', space=smem, size = 0x4, offset = 0x4, fixed_abs, tag = 'smem constant byte address 0x4 - core index']
  #allocation1 [shape = 'u32[144,128]{1,0:T(1,128)}', space=vmem, size = 0x12000, scoped, tag = 'internal scratch']
  #allocation2 [shape = 'f32[10,18,4]{2,1,0:T(8,128)}', space=vmem, size = 0x1e000, scoped, tag = 'scratch operand']
  %s0 = inlined_call_operand.vmem [shape: f32[2,16,16,4], index: 0, kind: input, shape index: {}]
  %s1 = inlined_call_operand.vmem [shape: f32[2,36,8], index: 1, kind: input, shape index: {}]
  %s2 = inlined_call_operand.vmem [shape: f32[2,1,8], index: 2, kind: input, shape index: {}]
  %s3 = inlined_call_operand.vmem [shape: f32[2,16,2,16,8], index: 3, kind: output, shape index: {}]
  %s4 = sld [smem:[#allocation0]]
  $region61: #{tpu_custom_call.1} parent=0
    _
  %s6 = ssub.s32 1, %s4
  %s7 = scalar_select 0, %s6, %s4
  loop: start=0, step=1, limit=6
  $region2: #{tpu_custom_call.1} parent=0 // loop_pre_header
    _
  $region3: #{tpu_custom_call.1} parent=0 // loop_header
    %s9 = sphi 0, %s13
    %p10 = scmp.ge.s32.totalorder %s9, 6
    %s16 = sphi 0, %s28
    %s17 = sphi 0, %s24
    %s18 = sphi 0, %s16
    %s19 = sphi 0, %s17
    %s20 = sphi 0, %s18
    %s21 = sphi 0, %s19
    %s31 = sphi 0, %s33
    %s34 = sphi 0, %s31
    %s35 = sphi 0, %s34
    %s51 = sphi 0, %s35
    %s55 = sphi 0, %s55
    %s57 = sphi 0, %s55
    %s58 = sphi 0, %s57
    %s72 = sphi 0, %s58
    %s76 = sphi 0, %s76
    %s78 = sphi 0, %s76
    %s79 = sphi 0, %s78
    %s93 = sphi 0, %s79
    %s101 = sphi 0, %s103
    %s104 = sphi 0, %s101
    %s105 = sphi 0, %s104
    %s121 = sphi 0, %s105
  $region4: #{tpu_custom_call.1} parent=0 // loop_header_branch
    %12 = sbr.rel (%p10) target = $region8
  $region5: #{tpu_custom_call.1} parent=0 // loop_body
    %s14 = ssub.s32 %s9, 1
    %s15 = ssub.s32 %s9, 2
    %s22 = sadd.s32 1, %s17
    %p23 = scmp.ge.s32.totalorder %s22, 2
    %s24 = scalar_select %p23, 0, %s22
    %s25 = sadd.s32 1, %s16
    %s26 = scalar_select %p23, %s25, %s16
    %p27 = scmp.ge.s32.totalorder %s26, 2
    %s28 = scalar_select %p27, 0, %s26
    %s29 = ssub.s32 %s16, %s28
    %p30 = scmp.eq.s32.totalorder %s29, 0
    %s32 = sadd.s32 %s31, 1
    %s33 = scalar_select %p30, %s31, %s32
    %p36 = pneg %p30
    %p37 = scmp.eq.s32.totalorder %s9, 3
    %p38 = por %p36, %p37
    %p39 = scmp.ne.s32.totalorder %s31, %s34
    %p40 = scmp.eq.s32.totalorder %s9, 0
    %p41 = por %p39, %p40
    %p42 = scmp.ne.s32.totalorder %s31, %s34
    %p43 = scmp.eq.s32.totalorder %s14, 3
    %p44 = por %p42, %p43
    %p45 = scmp.ne.s32.totalorder %s34, %s35
    %p46 = scmp.eq.s32.totalorder %s14, 0
    %p47 = por %p45, %p46
    %p48 = scmp.ne.s32.totalorder %s34, %s35
    %p49 = scmp.eq.s32.totalorder %s15, 3
    %p50 = por %p48, %p49
    %p52 = scmp.ne.s32.totalorder %s35, %s51
    %p53 = scmp.eq.s32.totalorder %s15, 0
    %p54 = por %p52, %p53
    %s56 = sadd.s32 %s55, 1
    %p59 = scmp.eq.s32.totalorder %s9, 3
    %p60 = scmp.ne.s32.totalorder %s55, %s57
    %p61 = scmp.eq.s32.totalorder %s9, 0
    %p62 = por %p60, %p61
    %p63 = scmp.ne.s32.totalorder %s55, %s57
    %p64 = scmp.eq.s32.totalorder %s14, 3
    %p65 = por %p63, %p64
    %p66 = scmp.ne.s32.totalorder %s57, %s58
    %p67 = scmp.eq.s32.totalorder %s14, 0
    %p68 = por %p66, %p67
    %p69 = scmp.ne.s32.totalorder %s57, %s58
    %p70 = scmp.eq.s32.totalorder %s15, 3
    %p71 = por %p69, %p70
    %p73 = scmp.ne.s32.totalorder %s58, %s72
    %p74 = scmp.eq.s32.totalorder %s15, 0
    %p75 = por %p73, %p74
    %s77 = sadd.s32 %s76, 1
    %p80 = scmp.eq.s32.totalorder %s9, 3
    %p81 = scmp.ne.s32.totalorder %s76, %s78
    %p82 = scmp.eq.s32.totalorder %s9, 0
    %p83 = por %p81, %p82
    %p84 = scmp.ne.s32.totalorder %s76, %s78
    %p85 = scmp.eq.s32.totalorder %s14, 3
    %p86 = por %p84, %p85
    %p87 = scmp.ne.s32.totalorder %s78, %s79
    %p88 = scmp.eq.s32.totalorder %s14, 0
    %p89 = por %p87, %p88
    %p90 = scmp.ne.s32.totalorder %s78, %s79
    %p91 = scmp.eq.s32.totalorder %s15, 3
    %p92 = por %p90, %p91
    %p94 = scmp.ne.s32.totalorder %s79, %s93
    %p95 = scmp.eq.s32.totalorder %s15, 0
    %p96 = por %p94, %p95
    %s97 = ssub.s32 %s16, %s28
    %s98 = ssub.s32 %s17, %s24
    %s99 = sor.u32 %s97, %s98
    %p100 = scmp.eq.s32.totalorder %s99, 0
    %s102 = sadd.s32 %s101, 1
    %s103 = scalar_select %p100, %s101, %s102
    %p106 = pneg %p100
    %p107 = scmp.eq.s32.totalorder %s9, 3
    %p108 = por %p106, %p107
    %p109 = scmp.ne.s32.totalorder %s101, %s104
    %p110 = scmp.eq.s32.totalorder %s9, 0
    %p111 = por %p109, %p110
    %p112 = scmp.ne.s32.totalorder %s101, %s104
    %p113 = scmp.eq.s32.totalorder %s14, 3
    %p114 = por %p112, %p113
    %p115 = scmp.ne.s32.totalorder %s104, %s105
    %p116 = scmp.eq.s32.totalorder %s14, 0
    %p117 = por %p115, %p116
    %p118 = scmp.ne.s32.totalorder %s104, %s105
    %p119 = scmp.eq.s32.totalorder %s15, 3
    %p120 = por %p118, %p119
    %p122 = scmp.ne.s32.totalorder %s105, %s121
    %p123 = scmp.eq.s32.totalorder %s15, 0
    %p124 = por %p122, %p123
    %p125 = scmp.le.s32.totalorder 1, %s9
    %p126 = scmp.lt.s32.totalorder %s9, 5
    %p127 = pnand %p125, %p126
    %p128 = pneg %p127
    // Predicated region
    $region9: #{tpu_custom_call.1} parent=5 // pred_check
      _
    $region10: #{tpu_custom_call.1} parent=5 // pred_check_branch
      %130 = sbr.rel (%p127) target = $region12
    $region11: #{tpu_custom_call.1} parent=5 // pred_region
      %s131 = ssub.s32 %s9, 1
      // Predicated region
      $region13: #{tpu_custom_call.1} parent=11 // pred_check
        %p132 = pneg %p68
      $region14: #{tpu_custom_call.1} parent=11 // pred_check_branch
        %134 = sbr.rel (%p132) target = $region16
      $region15: #{tpu_custom_call.1} parent=11 // pred_region
        _
      $region16: #{tpu_custom_call.1} parent=11 // pred_fallthru
        _
      // Predicated region
      $region17: #{tpu_custom_call.1} parent=11 // pred_check
        %p135 = pneg %p89
      $region18: #{tpu_custom_call.1} parent=11 // pred_check_branch
        %137 = sbr.rel (%p135) target = $region20
      $region19: #{tpu_custom_call.1} parent=11 // pred_region
        _
      $region20: #{tpu_custom_call.1} parent=11 // pred_fallthru
        _
    $region12: #{tpu_custom_call.1} parent=5 // pred_fallthru
      _
    %p138 = scmp.lt.s32.totalorder %s9, 4
    // Predicated region
    $region21: #{tpu_custom_call.1} parent=5 // pred_check
      %p139 = pneg %p138
    $region22: #{tpu_custom_call.1} parent=5 // pred_check_branch
      %141 = sbr.rel (%p139) target = $region24
    $region23: #{tpu_custom_call.1} parent=5 // pred_region
      // Predicated region
      $region25: #{tpu_custom_call.1} parent=23 // pred_check
        %p142 = pneg %p41
      $region26: #{tpu_custom_call.1} parent=23 // pred_check_branch
        %144 = sbr.rel (%p142) target = $region28
      $region27: #{tpu_custom_call.1} parent=23 // pred_region
        %p145 = scmp.lt.s32.totalorder %s16, 1
        %s146 = scalar_select %p145, %s16, 1
        %s147 = smul.addr %s146, 32
        %s148 = smul.addr %s147, 8
        %s149 = scalar_lea.vmem %s0, %s148
      $region28: #{tpu_custom_call.1} parent=23 // pred_fallthru
        _
    $region24: #{tpu_custom_call.1} parent=5 // pred_fallthru
      _
    %p150 = scmp.le.s32.totalorder 1, %s9
    %p151 = scmp.lt.s32.totalorder %s9, 5
    %p152 = pnand %p150, %p151
    %p153 = pneg %p152
    // Predicated region
    $region29: #{tpu_custom_call.1} parent=5 // pred_check
      _
    $region30: #{tpu_custom_call.1} parent=5 // pred_check_branch
      %155 = sbr.rel (%p152) target = $region32
    $region31: #{tpu_custom_call.1} parent=5 // pred_region
      %s156 = ssub.s32 %s9, 1
      %p157 = scmp.lt.s32.totalorder %s18, 1
      %s158 = scalar_select %p157, %s18, 1
      %s159 = smul.addr %s158, 32
      %s160 = smul.addr %s159, 8
      %s161 = scalar_lea.vmem %s0, %s160
      %p162 = pneg %p47
      %p163 = pneg %p44
      %p164 = pneg %p68
      %p165 = pneg %p65
      %p166 = pneg %p89
      %p167 = pneg %p86
      %p168 = pneg %p117
      %p169 = pneg %p114
      %s170 = smul.u32 8, %s19
      %p171 = scmp.lt.s32.totalorder %s18, 1
      %s172 = scalar_select %p171, %s18, 1
      %p173 = scmp.lt.s32.totalorder %s170, 15
      %s174 = scalar_select %p173, %s170, 15
      %s175 = smul.addr %s174, 4
      %s176 = smul.addr %s172, 64
      %s177 = sadd.s32 %s175, %s176
      %s178 = smul.addr %s177, 8
      %s179 = scalar_lea.vmem %s3, %s178
      %p180 = scmp.lt.s32.totalorder %s18, 1
      %s181 = scalar_select %p180, %s18, 1
      %s182 = smul.addr %s181, 32
      %s183 = smul.addr %s182, 8
      %s184 = scalar_lea.vmem %s0, %s183
      %s185 = smul.u32 8, %s19
      %p186 = scmp.lt.s32.totalorder %s18, 1
      %s187 = scalar_select %p186, %s18, 1
      %p188 = scmp.lt.s32.totalorder %s185, 15
      %s189 = scalar_select %p188, %s185, 15
      %s190 = smul.addr %s189, 4
      %s191 = smul.addr %s187, 64
      %s192 = sadd.s32 %s190, %s191
      %s193 = smul.addr %s192, 8
      %s194 = scalar_lea.vmem %s3, %s193
      %s195 = smul.u32 8, %s19
      %vm196 = vcmask 24576
      %197 = vst.msk [vmem:[#allocation2] sm:$0x1] %vm196, 0.0
      %198 = vst.msk [vmem:[#allocation2 + $0x18] sm:$0x1] %vm196, 0.0
      %199 = vst.msk [vmem:[#allocation2 + $0x30] sm:$0x1] %vm196, 0.0
      %200 = vst.msk [vmem:[#allocation2 + $0x48] sm:$0x1] %vm196, 0.0
      %201 = vst.msk [vmem:[#allocation2 + $0x60] sm:$0x1] %vm196, 0.0
      %202 = vst.msk [vmem:[#allocation2 + $0x78] sm:$0x1] %vm196, 0.0
      %203 = vst.msk [vmem:[#allocation2 + $0x90] sm:$0x1] %vm196, 0.0
      %204 = vst.msk [vmem:[#allocation2 + $0xa8] sm:$0x1] %vm196, 0.0
      %205 = vst.msk [vmem:[#allocation2 + $0xc0] sm:$0x1] %vm196, 0.0
      %206 = vst.msk [vmem:[#allocation2 + $0xd8] sm:$0x1] %vm196, 0.0
      %207 = vst.msk [vmem:[#allocation2 + $0x11] sm:$0x1] %vm196, 0.0
      %208 = vst.msk [vmem:[#allocation2 + $0x29] sm:$0x1] %vm196, 0.0
      %209 = vst.msk [vmem:[#allocation2 + $0x41] sm:$0x1] %vm196, 0.0
      %210 = vst.msk [vmem:[#allocation2 + $0x59] sm:$0x1] %vm196, 0.0
      %211 = vst.msk [vmem:[#allocation2 + $0x71] sm:$0x1] %vm196, 0.0
      %212 = vst.msk [vmem:[#allocation2 + $0x89] sm:$0x1] %vm196, 0.0
      %213 = vst.msk [vmem:[#allocation2 + $0xa1] sm:$0x1] %vm196, 0.0
      %214 = vst.msk [vmem:[#allocation2 + $0xb9] sm:$0x1] %vm196, 0.0
      %215 = vst.msk [vmem:[#allocation2 + $0xd1] sm:$0x1] %vm196, 0.0
      %216 = vst.msk [vmem:[#allocation2 + $0xe9] sm:$0x1] %vm196, 0.0
      %s217 = smul.u32 %s19, 8
      %s218 = smul.u32 %s217, 16
      %s219 = scalar_lea.vmem %s184, %s218
      %v220 = vld [vmem:[%s219] sm:$0xff]
      %v221 = vld [vmem:[%s219 + $0x8] sm:$0xff]
      %v222 = vld [vmem:[%s219 + $0x10] sm:$0xff]
      %v223 = vld [vmem:[%s219 + $0x18] sm:$0xff]
      %v224 = vld [vmem:[%s219 + $0x20] sm:$0xff]
      %v225 = vld [vmem:[%s219 + $0x28] sm:$0xff]
      %v226 = vld [vmem:[%s219 + $0x30] sm:$0xff]
      %v227 = vld [vmem:[%s219 + $0x38] sm:$0xff]
      %v228 = vld [vmem:[%s219 + $0x40] sm:$0xff]
      %v229 = vld [vmem:[%s219 + $0x48] sm:$0xff]
      %v230 = vld [vmem:[%s219 + $0x50] sm:$0xff]
      %v231 = vld [vmem:[%s219 + $0x58] sm:$0xff]
      %v232 = vld [vmem:[%s219 + $0x60] sm:$0xff]
      %v233 = vld [vmem:[%s219 + $0x68] sm:$0xff]
      %v234 = vld [vmem:[%s219 + $0x70] sm:$0xff]
      %v235 = vld [vmem:[%s219 + $0x78] sm:$0xff]
      %s236 = scalar_lea.vmem [#allocation2], 24
      %vm237 = vcmask 31744
      %238 = vst.msk [vmem:[%s236 + $0x1] sm:$0xff] %vm237, %v220
      %239 = vst.msk [vmem:[%s236 + $0x9] sm:$0xff] %vm237, %v221
      %240 = vst.msk [vmem:[%s236 + $0x19] sm:$0xff] %vm237, %v222
      %241 = vst.msk [vmem:[%s236 + $0x21] sm:$0xff] %vm237, %v223
      %242 = vst.msk [vmem:[%s236 + $0x31] sm:$0xff] %vm237, %v224
      %243 = vst.msk [vmem:[%s236 + $0x39] sm:$0xff] %vm237, %v225
      %244 = vst.msk [vmem:[%s236 + $0x49] sm:$0xff] %vm237, %v226
      %245 = vst.msk [vmem:[%s236 + $0x51] sm:$0xff] %vm237, %v227
      %246 = vst.msk [vmem:[%s236 + $0x61] sm:$0xff] %vm237, %v228
      %247 = vst.msk [vmem:[%s236 + $0x69] sm:$0xff] %vm237, %v229
      %248 = vst.msk [vmem:[%s236 + $0x79] sm:$0xff] %vm237, %v230
      %249 = vst.msk [vmem:[%s236 + $0x81] sm:$0xff] %vm237, %v231
      %250 = vst.msk [vmem:[%s236 + $0x91] sm:$0xff] %vm237, %v232
      %251 = vst.msk [vmem:[%s236 + $0x99] sm:$0xff] %vm237, %v233
      %252 = vst.msk [vmem:[%s236 + $0xa9] sm:$0xff] %vm237, %v234
      %253 = vst.msk [vmem:[%s236 + $0xb1] sm:$0xff] %vm237, %v235
      %p254 = scmp.eq.s32.totalorder %s19, 0
      // Predicated region
      $region33: #{tpu_custom_call.1} parent=31 // pred_check
        %p255 = pneg %p254
      $region34: #{tpu_custom_call.1} parent=31 // pred_check_branch
        %257 = sbr.rel (%p255) target = $region36
      $region35: #{tpu_custom_call.1} parent=31 // pred_region
        %258 = vst.msk [vmem:[#allocation2 + $0x1] sm:$0xff] %vm237, 0.0
        %259 = vst.msk [vmem:[#allocation2 + $0x9] sm:$0xff] %vm237, 0.0
      $region36: #{tpu_custom_call.1} parent=31 // pred_fallthru
        _
      %p260 = scmp.gt.s32.totalorder %s19, 0
      // Predicated region
      $region37: #{tpu_custom_call.1} parent=31 // pred_check
        %p261 = pneg %p260
      $region38: #{tpu_custom_call.1} parent=31 // pred_check_branch
        %263 = sbr.rel (%p261) target = $region40
      $region39: #{tpu_custom_call.1} parent=31 // pred_region
        %s264 = ssub.s32 %s217, 1
        %s265 = smul.u32 %s264, 16
        %s266 = scalar_lea.vmem %s184, %s265
        %v267 = vld [vmem:[%s266] sm:$0xff]
        %v268 = vld [vmem:[%s266 + $0x8] sm:$0xff]
        %269 = vst.msk [vmem:[#allocation2 + $0x1] sm:$0xff] %vm237, %v267
        %270 = vst.msk [vmem:[#allocation2 + $0x9] sm:$0xff] %vm237, %v268
      $region40: #{tpu_custom_call.1} parent=31 // pred_fallthru
        _
      %p271 = scmp.eq.s32.totalorder %s19, 1
      // Predicated region
      $region41: #{tpu_custom_call.1} parent=31 // pred_check
        %p272 = pneg %p271
      $region42: #{tpu_custom_call.1} parent=31 // pred_check_branch
        %274 = sbr.rel (%p272) target = $region44
      $region43: #{tpu_custom_call.1} parent=31 // pred_region
        %s275 = scalar_lea.vmem [#allocation2], 216
        %276 = vst.msk [vmem:[%s275 + $0x1] sm:$0xff] %vm237, 0.0
        %277 = vst.msk [vmem:[%s275 + $0x9] sm:$0xff] %vm237, 0.0
      $region44: #{tpu_custom_call.1} parent=31 // pred_fallthru
        _
      %p278 = scmp.lt.s32.totalorder %s19, 1
      // Predicated region
      $region45: #{tpu_custom_call.1} parent=31 // pred_check
        %p279 = pneg %p278
      $region46: #{tpu_custom_call.1} parent=31 // pred_check_branch
        %281 = sbr.rel (%p279) target = $region48
      $region47: #{tpu_custom_call.1} parent=31 // pred_region
        %s282 = sadd.s32 %s19, 1
        %s283 = smul.u32 %s282, 8
        %s284 = smul.u32 %s283, 16
        %s285 = scalar_lea.vmem %s184, %s284
        %v286 = vld [vmem:[%s285] sm:$0xff]
        %v287 = vld [vmem:[%s285 + $0x8] sm:$0xff]
        %s288 = scalar_lea.vmem [#allocation2], 216
        %289 = vst.msk [vmem:[%s288 + $0x1] sm:$0xff] %vm237, %v286
        %290 = vst.msk [vmem:[%s288 + $0x9] sm:$0xff] %vm237, %v287
      $region48: #{tpu_custom_call.1} parent=31 // pred_fallthru
        _
      %v291 = vld [vmem:[#allocation2] sm:$0xff]
      %v292 = vld [vmem:[#allocation2 + $0x8] sm:$0xff]
      %v293 = vld [vmem:[#allocation2 + $0x10] sm:$0x3]
      %v294 = vld [vmem:[#allocation2 + $0x18] sm:$0xff]
      %v295 = vld [vmem:[#allocation2 + $0x20] sm:$0xff]
      %v296 = vld [vmem:[#allocation2 + $0x28] sm:$0x3]
      %v297 = vld [vmem:[#allocation2 + $0x30] sm:$0xff]
      %v298 = vld [vmem:[#allocation2 + $0x38] sm:$0xff]
      %v299 = vld [vmem:[#allocation2 + $0x40] sm:$0x3]
      %v300 = vld [vmem:[#allocation2 + $0x48] sm:$0xff]
      %v301 = vld [vmem:[#allocation2 + $0x50] sm:$0xff]
      %v302 = vld [vmem:[#allocation2 + $0x58] sm:$0x3]
      %v303 = vld [vmem:[#allocation2 + $0x60] sm:$0xff]
      %v304 = vld [vmem:[#allocation2 + $0x68] sm:$0xff]
      %v305 = vld [vmem:[#allocation2 + $0x70] sm:$0x3]
      %v306 = vld [vmem:[#allocation2 + $0x78] sm:$0xff]
      %v307 = vld [vmem:[#allocation2 + $0x80] sm:$0xff]
      %v308 = vld [vmem:[#allocation2 + $0x88] sm:$0x3]
      %v309 = vld [vmem:[#allocation2 + $0x90] sm:$0xff]
      %v310 = vld [vmem:[#allocation2 + $0x98] sm:$0xff]
      %v311 = vld [vmem:[#allocation2 + $0xa0] sm:$0x3]
      %v312 = vld [vmem:[#allocation2 + $0xa8] sm:$0xff]
      %v313 = vld [vmem:[#allocation2 + $0xb0] sm:$0xff]
      %v314 = vld [vmem:[#allocation2 + $0xb8] sm:$0x3]
      %v315 = vld [vmem:[#allocation2 + $0xc0] sm:$0xff]
      %v316 = vld [vmem:[#allocation2 + $0xc8] sm:$0xff]
      %v317 = vld [vmem:[#allocation2 + $0xd0] sm:$0x3]
      %v318 = vld [vmem:[#allocation2 + $0xd8] sm:$0xff]
      %v319 = vld [vmem:[#allocation2 + $0xe0] sm:$0xff]
      %v320 = vld [vmem:[#allocation2 + $0xe8] sm:$0x3]
      %vm345 = vcmask 1046528
      %v346 = vrot.slane %v291, 1
      %v347 = vrot.slane %v292, 1
      %v348 = vsel %vm345, %v346, %v347
      %v349 = vrot.slane %v293, 1
      %v350 = vsel %vm345, %v347, %v349
      %v351 = vrot.slane %v294, 1
      %v352 = vrot.slane %v295, 1
      %v353 = vsel %vm345, %v351, %v352
      %v354 = vrot.slane %v296, 1
      %v355 = vsel %vm345, %v352, %v354
      %v356 = vrot.slane %v297, 1
      %v357 = vrot.slane %v298, 1
      %v358 = vsel %vm345, %v356, %v357
      %v359 = vrot.slane %v299, 1
      %v360 = vsel %vm345, %v357, %v359
      %v361 = vrot.slane %v300, 1
      %v362 = vrot.slane %v301, 1
      %v363 = vsel %vm345, %v361, %v362
      %v364 = vrot.slane %v302, 1
      %v365 = vsel %vm345, %v362, %v364
      %v366 = vrot.slane %v303, 1
      %v367 = vrot.slane %v304, 1
      %v368 = vsel %vm345, %v366, %v367
      %v369 = vrot.slane %v305, 1
      %v370 = vsel %vm345, %v367, %v369
      %v371 = vrot.slane %v306, 1
      %v372 = vrot.slane %v307, 1
      %v373 = vsel %vm345, %v371, %v372
      %v374 = vrot.slane %v308, 1
      %v375 = vsel %vm345, %v372, %v374
      %v376 = vrot.slane %v309, 1
      %v377 = vrot.slane %v310, 1
      %v378 = vsel %vm345, %v376, %v377
      %v379 = vrot.slane %v311, 1
      %v380 = vsel %vm345, %v377, %v379
      %v381 = vrot.slane %v312, 1
      %v382 = vrot.slane %v313, 1
      %v383 = vsel %vm345, %v381, %v382
      %v384 = vrot.slane %v314, 1
      %v385 = vsel %vm345, %v382, %v384
      %vm386 = vcmask 1045504
      %v387 = vrot.slane %v291, 2
      %v388 = vrot.slane %v292, 2
      %v389 = vsel %vm386, %v387, %v388
      %v390 = vrot.slane %v293, 2
      %v391 = vsel %vm386, %v388, %v390
      %v392 = vrot.slane %v294, 2
      %v393 = vrot.slane %v295, 2
      %v394 = vsel %vm386, %v392, %v393
      %v395 = vrot.slane %v296, 2
      %v396 = vsel %vm386, %v393, %v395
      %v397 = vrot.slane %v297, 2
      %v398 = vrot.slane %v298, 2
      %v399 = vsel %vm386, %v397, %v398
      %v400 = vrot.slane %v299, 2
      %v401 = vsel %vm386, %v398, %v400
      %v402 = vrot.slane %v300, 2
      %v403 = vrot.slane %v301, 2
      %v404 = vsel %vm386, %v402, %v403
      %v405 = vrot.slane %v302, 2
      %v406 = vsel %vm386, %v403, %v405
      %v407 = vrot.slane %v303, 2
      %v408 = vrot.slane %v304, 2
      %v409 = vsel %vm386, %v407, %v408
      %v410 = vrot.slane %v305, 2
      %v411 = vsel %vm386, %v408, %v410
      %v412 = vrot.slane %v306, 2
      %v413 = vrot.slane %v307, 2
      %v414 = vsel %vm386, %v412, %v413
      %v415 = vrot.slane %v308, 2
      %v416 = vsel %vm386, %v413, %v415
      %v417 = vrot.slane %v309, 2
      %v418 = vrot.slane %v310, 2
      %v419 = vsel %vm386, %v417, %v418
      %v420 = vrot.slane %v311, 2
      %v421 = vsel %vm386, %v418, %v420
      %v422 = vrot.slane %v312, 2
      %v423 = vrot.slane %v313, 2
      %v424 = vsel %vm386, %v422, %v423
      %v425 = vrot.slane %v314, 2
      %v426 = vsel %vm386, %v423, %v425
      %v430 = vrot.slane %v315, 1
      %v431 = vrot.slane %v316, 1
      %v432 = vsel %vm345, %v430, %v431
      %v433 = vrot.slane %v317, 1
      %v434 = vsel %vm345, %v431, %v433
      %v435 = vrot.slane %v315, 2
      %v436 = vrot.slane %v316, 2
      %v437 = vsel %vm386, %v435, %v436
      %v438 = vrot.slane %v317, 2
      %v439 = vsel %vm386, %v436, %v438
      %v443 = vrot.slane %v318, 1
      %v444 = vrot.slane %v319, 1
      %v445 = vsel %vm345, %v443, %v444
      %v446 = vrot.slane %v320, 1
      %v447 = vsel %vm345, %v444, %v446
      %v448 = vrot.slane %v318, 2
      %v449 = vrot.slane %v319, 2
      %v450 = vsel %vm386, %v448, %v449
      %v451 = vrot.slane %v320, 2
      %v452 = vsel %vm386, %v449, %v451
      %453 = vrot.lane.b32.xlu0 %v348, 4
      %v454 = vpop.permute.xlu0 %453
      %455 = vrot.lane.b32.xlu0 %v350, 4
      %v456 = vpop.permute.xlu0 %455
      %457 = vrot.lane.b32.xlu0 %v353, 4
      %v458 = vpop.permute.xlu0 %457
      %459 = vrot.lane.b32.xlu0 %v355, 4
      %v460 = vpop.permute.xlu0 %459
      %461 = vrot.lane.b32.xlu0 %v358, 4
      %v462 = vpop.permute.xlu0 %461
      %463 = vrot.lane.b32.xlu0 %v360, 4
      %v464 = vpop.permute.xlu0 %463
      %465 = vrot.lane.b32.xlu0 %v363, 4
      %v466 = vpop.permute.xlu0 %465
      %467 = vrot.lane.b32.xlu0 %v365, 4
      %v468 = vpop.permute.xlu0 %467
      %469 = vrot.lane.b32.xlu0 %v368, 4
      %v470 = vpop.permute.xlu0 %469
      %471 = vrot.lane.b32.xlu0 %v370, 4
      %v472 = vpop.permute.xlu0 %471
      %473 = vrot.lane.b32.xlu0 %v373, 4
      %v474 = vpop.permute.xlu0 %473
      %475 = vrot.lane.b32.xlu0 %v375, 4
      %v476 = vpop.permute.xlu0 %475
      %477 = vrot.lane.b32.xlu0 %v378, 4
      %v478 = vpop.permute.xlu0 %477
      %479 = vrot.lane.b32.xlu0 %v380, 4
      %v480 = vpop.permute.xlu0 %479
      %481 = vrot.lane.b32.xlu0 %v383, 4
      %v482 = vpop.permute.xlu0 %481
      %483 = vrot.lane.b32.xlu0 %v385, 4
      %v484 = vpop.permute.xlu0 %483
      %501 = vrot.lane.b32.xlu0 %v389, 8
      %v502 = vpop.permute.xlu0 %501
      %503 = vrot.lane.b32.xlu0 %v391, 8
      %v504 = vpop.permute.xlu0 %503
      %505 = vrot.lane.b32.xlu0 %v394, 8
      %v506 = vpop.permute.xlu0 %505
      %507 = vrot.lane.b32.xlu0 %v396, 8
      %v508 = vpop.permute.xlu0 %507
      %509 = vrot.lane.b32.xlu0 %v399, 8
      %v510 = vpop.permute.xlu0 %509
      %511 = vrot.lane.b32.xlu0 %v401, 8
      %v512 = vpop.permute.xlu0 %511
      %513 = vrot.lane.b32.xlu0 %v404, 8
      %v514 = vpop.permute.xlu0 %513
      %515 = vrot.lane.b32.xlu0 %v406, 8
      %v516 = vpop.permute.xlu0 %515
      %517 = vrot.lane.b32.xlu0 %v409, 8
      %v518 = vpop.permute.xlu0 %517
      %519 = vrot.lane.b32.xlu0 %v411, 8
      %v520 = vpop.permute.xlu0 %519
      %521 = vrot.lane.b32.xlu0 %v414, 8
      %v522 = vpop.permute.xlu0 %521
      %523 = vrot.lane.b32.xlu0 %v416, 8
      %v524 = vpop.permute.xlu0 %523
      %525 = vrot.lane.b32.xlu0 %v419, 8
      %v526 = vpop.permute.xlu0 %525
      %527 = vrot.lane.b32.xlu0 %v421, 8
      %v528 = vpop.permute.xlu0 %527
      %529 = vrot.lane.b32.xlu0 %v424, 8
      %v530 = vpop.permute.xlu0 %529
      %531 = vrot.lane.b32.xlu0 %v426, 8
      %v532 = vpop.permute.xlu0 %531
      %549 = vrot.lane.b32.xlu0 %v294, 12
      %v550 = vpop.permute.xlu0 %549
      %551 = vrot.lane.b32.xlu0 %v295, 12
      %v552 = vpop.permute.xlu0 %551
      %553 = vrot.lane.b32.xlu0 %v297, 12
      %v554 = vpop.permute.xlu0 %553
      %555 = vrot.lane.b32.xlu0 %v298, 12
      %v556 = vpop.permute.xlu0 %555
      %557 = vrot.lane.b32.xlu0 %v300, 12
      %v558 = vpop.permute.xlu0 %557
      %559 = vrot.lane.b32.xlu0 %v301, 12
      %v560 = vpop.permute.xlu0 %559
      %561 = vrot.lane.b32.xlu0 %v303, 12
      %v562 = vpop.permute.xlu0 %561
      %563 = vrot.lane.b32.xlu0 %v304, 12
      %v564 = vpop.permute.xlu0 %563
      %565 = vrot.lane.b32.xlu0 %v306, 12
      %v566 = vpop.permute.xlu0 %565
      %567 = vrot.lane.b32.xlu0 %v307, 12
      %v568 = vpop.permute.xlu0 %567
      %569 = vrot.lane.b32.xlu0 %v309, 12
      %v570 = vpop.permute.xlu0 %569
      %571 = vrot.lane.b32.xlu0 %v310, 12
      %v572 = vpop.permute.xlu0 %571
      %573 = vrot.lane.b32.xlu0 %v312, 12
      %v574 = vpop.permute.xlu0 %573
      %575 = vrot.lane.b32.xlu0 %v313, 12
      %v576 = vpop.permute.xlu0 %575
      %577 = vrot.lane.b32.xlu0 %v315, 12
      %v578 = vpop.permute.xlu0 %577
      %579 = vrot.lane.b32.xlu0 %v316, 12
      %v580 = vpop.permute.xlu0 %579
      %597 = vrot.lane.b32.xlu0 %v353, 16
      %v598 = vpop.permute.xlu0 %597
      %599 = vrot.lane.b32.xlu0 %v355, 16
      %v600 = vpop.permute.xlu0 %599
      %601 = vrot.lane.b32.xlu0 %v358, 16
      %v602 = vpop.permute.xlu0 %601
      %603 = vrot.lane.b32.xlu0 %v360, 16
      %v604 = vpop.permute.xlu0 %603
      %605 = vrot.lane.b32.xlu0 %v363, 16
      %v606 = vpop.permute.xlu0 %605
      %607 = vrot.lane.b32.xlu0 %v365, 16
      %v608 = vpop.permute.xlu0 %607
      %609 = vrot.lane.b32.xlu0 %v368, 16
      %v610 = vpop.permute.xlu0 %609
      %611 = vrot.lane.b32.xlu0 %v370, 16
      %v612 = vpop.permute.xlu0 %611
      %613 = vrot.lane.b32.xlu0 %v373, 16
      %v614 = vpop.permute.xlu0 %613
      %615 = vrot.lane.b32.xlu0 %v375, 16
      %v616 = vpop.permute.xlu0 %615
      %617 = vrot.lane.b32.xlu0 %v378, 16
      %v618 = vpop.permute.xlu0 %617
      %619 = vrot.lane.b32.xlu0 %v380, 16
      %v620 = vpop.permute.xlu0 %619
      %621 = vrot.lane.b32.xlu0 %v383, 16
      %v622 = vpop.permute.xlu0 %621
      %623 = vrot.lane.b32.xlu0 %v385, 16
      %v624 = vpop.permute.xlu0 %623
      %625 = vrot.lane.b32.xlu0 %v432, 16
      %v626 = vpop.permute.xlu0 %625
      %627 = vrot.lane.b32.xlu0 %v434, 16
      %v628 = vpop.permute.xlu0 %627
      %645 = vrot.lane.b32.xlu0 %v394, 20
      %v646 = vpop.permute.xlu0 %645
      %647 = vrot.lane.b32.xlu0 %v396, 20
      %v648 = vpop.permute.xlu0 %647
      %649 = vrot.lane.b32.xlu0 %v399, 20
      %v650 = vpop.permute.xlu0 %649
      %651 = vrot.lane.b32.xlu0 %v401, 20
      %v652 = vpop.permute.xlu0 %651
      %653 = vrot.lane.b32.xlu0 %v404, 20
      %v654 = vpop.permute.xlu0 %653
      %655 = vrot.lane.b32.xlu0 %v406, 20
      %v656 = vpop.permute.xlu0 %655
      %657 = vrot.lane.b32.xlu0 %v409, 20
      %v658 = vpop.permute.xlu0 %657
      %659 = vrot.lane.b32.xlu0 %v411, 20
      %v660 = vpop.permute.xlu0 %659
      %661 = vrot.lane.b32.xlu0 %v414, 20
      %v662 = vpop.permute.xlu0 %661
      %663 = vrot.lane.b32.xlu0 %v416, 20
      %v664 = vpop.permute.xlu0 %663
      %665 = vrot.lane.b32.xlu0 %v419, 20
      %v666 = vpop.permute.xlu0 %665
      %667 = vrot.lane.b32.xlu0 %v421, 20
      %v668 = vpop.permute.xlu0 %667
      %669 = vrot.lane.b32.xlu0 %v424, 20
      %v670 = vpop.permute.xlu0 %669
      %671 = vrot.lane.b32.xlu0 %v426, 20
      %v672 = vpop.permute.xlu0 %671
      %673 = vrot.lane.b32.xlu0 %v437, 20
      %v674 = vpop.permute.xlu0 %673
      %675 = vrot.lane.b32.xlu0 %v439, 20
      %v676 = vpop.permute.xlu0 %675
      %693 = vrot.lane.b32.xlu0 %v297, 24
      %v694 = vpop.permute.xlu0 %693
      %695 = vrot.lane.b32.xlu0 %v298, 24
      %v696 = vpop.permute.xlu0 %695
      %697 = vrot.lane.b32.xlu0 %v300, 24
      %v698 = vpop.permute.xlu0 %697
      %699 = vrot.lane.b32.xlu0 %v301, 24
      %v700 = vpop.permute.xlu0 %699
      %701 = vrot.lane.b32.xlu0 %v303, 24
      %v702 = vpop.permute.xlu0 %701
      %703 = vrot.lane.b32.xlu0 %v304, 24
      %v704 = vpop.permute.xlu0 %703
      %705 = vrot.lane.b32.xlu0 %v306, 24
      %v706 = vpop.permute.xlu0 %705
      %707 = vrot.lane.b32.xlu0 %v307, 24
      %v708 = vpop.permute.xlu0 %707
      %709 = vrot.lane.b32.xlu0 %v309, 24
      %v710 = vpop.permute.xlu0 %709
      %711 = vrot.lane.b32.xlu0 %v310, 24
      %v712 = vpop.permute.xlu0 %711
      %713 = vrot.lane.b32.xlu0 %v312, 24
      %v714 = vpop.permute.xlu0 %713
      %715 = vrot.lane.b32.xlu0 %v313, 24
      %v716 = vpop.permute.xlu0 %715
      %717 = vrot.lane.b32.xlu0 %v315, 24
      %v718 = vpop.permute.xlu0 %717
      %719 = vrot.lane.b32.xlu0 %v316, 24
      %v720 = vpop.permute.xlu0 %719
      %721 = vrot.lane.b32.xlu0 %v318, 24
      %v722 = vpop.permute.xlu0 %721
      %723 = vrot.lane.b32.xlu0 %v319, 24
      %v724 = vpop.permute.xlu0 %723
      %741 = vrot.lane.b32.xlu0 %v358, 28
      %v742 = vpop.permute.xlu0 %741
      %743 = vrot.lane.b32.xlu0 %v360, 28
      %v744 = vpop.permute.xlu0 %743
      %745 = vrot.lane.b32.xlu0 %v363, 28
      %v746 = vpop.permute.xlu0 %745
      %747 = vrot.lane.b32.xlu0 %v365, 28
      %v748 = vpop.permute.xlu0 %747
      %749 = vrot.lane.b32.xlu0 %v368, 28
      %v750 = vpop.permute.xlu0 %749
      %751 = vrot.lane.b32.xlu0 %v370, 28
      %v752 = vpop.permute.xlu0 %751
      %753 = vrot.lane.b32.xlu0 %v373, 28
      %v754 = vpop.permute.xlu0 %753
      %755 = vrot.lane.b32.xlu0 %v375, 28
      %v756 = vpop.permute.xlu0 %755
      %757 = vrot.lane.b32.xlu0 %v378, 28
      %v758 = vpop.permute.xlu0 %757
      %759 = vrot.lane.b32.xlu0 %v380, 28
      %v760 = vpop.permute.xlu0 %759
      %761 = vrot.lane.b32.xlu0 %v383, 28
      %v762 = vpop.permute.xlu0 %761
      %763 = vrot.lane.b32.xlu0 %v385, 28
      %v764 = vpop.permute.xlu0 %763
      %765 = vrot.lane.b32.xlu0 %v432, 28
      %v766 = vpop.permute.xlu0 %765
      %767 = vrot.lane.b32.xlu0 %v434, 28
      %v768 = vpop.permute.xlu0 %767
      %769 = vrot.lane.b32.xlu0 %v445, 28
      %v770 = vpop.permute.xlu0 %769
      %771 = vrot.lane.b32.xlu0 %v447, 28
      %v772 = vpop.permute.xlu0 %771
      %789 = vrot.lane.b32.xlu0 %v399, 32
      %v790 = vpop.permute.xlu0 %789
      %791 = vrot.lane.b32.xlu0 %v401, 32
      %v792 = vpop.permute.xlu0 %791
      %793 = vrot.lane.b32.xlu0 %v404, 32
      %v794 = vpop.permute.xlu0 %793
      %795 = vrot.lane.b32.xlu0 %v406, 32
      %v796 = vpop.permute.xlu0 %795
      %797 = vrot.lane.b32.xlu0 %v409, 32
      %v798 = vpop.permute.xlu0 %797
      %799 = vrot.lane.b32.xlu0 %v411, 32
      %v800 = vpop.permute.xlu0 %799
      %801 = vrot.lane.b32.xlu0 %v414, 32
      %v802 = vpop.permute.xlu0 %801
      %803 = vrot.lane.b32.xlu0 %v416, 32
      %v804 = vpop.permute.xlu0 %803
      %805 = vrot.lane.b32.xlu0 %v419, 32
      %v806 = vpop.permute.xlu0 %805
      %807 = vrot.lane.b32.xlu0 %v421, 32
      %v808 = vpop.permute.xlu0 %807
      %809 = vrot.lane.b32.xlu0 %v424, 32
      %v810 = vpop.permute.xlu0 %809
      %811 = vrot.lane.b32.xlu0 %v426, 32
      %v812 = vpop.permute.xlu0 %811
      %813 = vrot.lane.b32.xlu0 %v437, 32
      %v814 = vpop.permute.xlu0 %813
      %815 = vrot.lane.b32.xlu0 %v439, 32
      %v816 = vpop.permute.xlu0 %815
      %817 = vrot.lane.b32.xlu0 %v450, 32
      %v818 = vpop.permute.xlu0 %817
      %819 = vrot.lane.b32.xlu0 %v452, 32
      %v820 = vpop.permute.xlu0 %819
      %v837 = vsel %vm237, %v291, %v454
      %v838 = vsel %vm237, %v292, %v456
      %v839 = vsel %vm237, %v294, %v458
      %v840 = vsel %vm237, %v295, %v460
      %v841 = vsel %vm237, %v297, %v462
      %v842 = vsel %vm237, %v298, %v464
      %v843 = vsel %vm237, %v300, %v466
      %v844 = vsel %vm237, %v301, %v468
      %v845 = vsel %vm237, %v303, %v470
      %v846 = vsel %vm237, %v304, %v472
      %v847 = vsel %vm237, %v306, %v474
      %v848 = vsel %vm237, %v307, %v476
      %v849 = vsel %vm237, %v309, %v478
      %v850 = vsel %vm237, %v310, %v480
      %v851 = vsel %vm237, %v312, %v482
      %v852 = vsel %vm237, %v313, %v484
      %vm853 = vcmask 64512
      %v854 = vsel %vm853, %v837, %v502
      %v855 = vsel %vm853, %v838, %v504
      %v856 = vsel %vm853, %v839, %v506
      %v857 = vsel %vm853, %v840, %v508
      %v858 = vsel %vm853, %v841, %v510
      %v859 = vsel %vm853, %v842, %v512
      %v860 = vsel %vm853, %v843, %v514
      %v861 = vsel %vm853, %v844, %v516
      %v862 = vsel %vm853, %v845, %v518
      %v863 = vsel %vm853, %v846, %v520
      %v864 = vsel %vm853, %v847, %v522
      %v865 = vsel %vm853, %v848, %v524
      %v866 = vsel %vm853, %v849, %v526
      %v867 = vsel %vm853, %v850, %v528
      %v868 = vsel %vm853, %v851, %v530
      %v869 = vsel %vm853, %v852, %v532
      %vm870 = vcmask 97280
      %v871 = vsel %vm870, %v854, %v550
      %v872 = vsel %vm870, %v855, %v552
      %v873 = vsel %vm870, %v856, %v554
      %v874 = vsel %vm870, %v857, %v556
      %v875 = vsel %vm870, %v858, %v558
      %v876 = vsel %vm870, %v859, %v560
      %v877 = vsel %vm870, %v860, %v562
      %v878 = vsel %vm870, %v861, %v564
      %v879 = vsel %vm870, %v862, %v566
      %v880 = vsel %vm870, %v863, %v568
      %v881 = vsel %vm870, %v864, %v570
      %v882 = vsel %vm870, %v865, %v572
      %v883 = vsel %vm870, %v866, %v574
      %v884 = vsel %vm870, %v867, %v576
      %v885 = vsel %vm870, %v868, %v578
      %v886 = vsel %vm870, %v869, %v580
      %vm887 = vcmask 130048
      %v888 = vsel %vm887, %v871, %v598
      %v889 = vsel %vm887, %v872, %v600
      %v890 = vsel %vm887, %v873, %v602
      %v891 = vsel %vm887, %v874, %v604
      %v892 = vsel %vm887, %v875, %v606
      %v893 = vsel %vm887, %v876, %v608
      %v894 = vsel %vm887, %v877, %v610
      %v895 = vsel %vm887, %v878, %v612
      %v896 = vsel %vm887, %v879, %v614
      %v897 = vsel %vm887, %v880, %v616
      %v898 = vsel %vm887, %v881, %v618
      %v899 = vsel %vm887, %v882, %v620
      %v900 = vsel %vm887, %v883, %v622
      %v901 = vsel %vm887, %v884, %v624
      %v902 = vsel %vm887, %v885, %v626
      %v903 = vsel %vm887, %v886, %v628
      %vm904 = vcmask 162816
      %v905 = vsel %vm904, %v888, %v646
      %v906 = vsel %vm904, %v889, %v648
      %v907 = vsel %vm904, %v890, %v650
      %v908 = vsel %vm904, %v891, %v652
      %v909 = vsel %vm904, %v892, %v654
      %v910 = vsel %vm904, %v893, %v656
      %v911 = vsel %vm904, %v894, %v658
      %v912 = vsel %vm904, %v895, %v660
      %v913 = vsel %vm904, %v896, %v662
      %v914 = vsel %vm904, %v897, %v664
      %v915 = vsel %vm904, %v898, %v666
      %v916 = vsel %vm904, %v899, %v668
      %v917 = vsel %vm904, %v900, %v670
      %v918 = vsel %vm904, %v901, %v672
      %v919 = vsel %vm904, %v902, %v674
      %v920 = vsel %vm904, %v903, %v676
      %vm921 = vcmask 195584
      %v922 = vsel %vm921, %v905, %v694
      %v923 = vsel %vm921, %v906, %v696
      %v924 = vsel %vm921, %v907, %v698
      %v925 = vsel %vm921, %v908, %v700
      %v926 = vsel %vm921, %v909, %v702
      %v927 = vsel %vm921, %v910, %v704
      %v928 = vsel %vm921, %v911, %v706
      %v929 = vsel %vm921, %v912, %v708
      %v930 = vsel %vm921, %v913, %v710
      %v931 = vsel %vm921, %v914, %v712
      %v932 = vsel %vm921, %v915, %v714
      %v933 = vsel %vm921, %v916, %v716
      %v934 = vsel %vm921, %v917, %v718
      %v935 = vsel %vm921, %v918, %v720
      %v936 = vsel %vm921, %v919, %v722
      %v937 = vsel %vm921, %v920, %v724
      %vm938 = vcmask 228352
      %v939 = vsel %vm938, %v922, %v742
      %v940 = vsel %vm938, %v923, %v744
      %v941 = vsel %vm938, %v924, %v746
      %v942 = vsel %vm938, %v925, %v748
      %v943 = vsel %vm938, %v926, %v750
      %v944 = vsel %vm938, %v927, %v752
      %v945 = vsel %vm938, %v928, %v754
      %v946 = vsel %vm938, %v929, %v756
      %v947 = vsel %vm938, %v930, %v758
      %v948 = vsel %vm938, %v931, %v760
      %v949 = vsel %vm938, %v932, %v762
      %v950 = vsel %vm938, %v933, %v764
      %v951 = vsel %vm938, %v934, %v766
      %v952 = vsel %vm938, %v935, %v768
      %v953 = vsel %vm938, %v936, %v770
      %v954 = vsel %vm938, %v937, %v772
      %vm955 = vcmask 261120
      %v956 = vsel %vm955, %v939, %v790
      %v957 = vsel %vm955, %v940, %v792
      %v958 = vsel %vm955, %v941, %v794
      %v959 = vsel %vm955, %v942, %v796
      %v960 = vsel %vm955, %v943, %v798
      %v961 = vsel %vm955, %v944, %v800
      %v962 = vsel %vm955, %v945, %v802
      %v963 = vsel %vm955, %v946, %v804
      %v964 = vsel %vm955, %v947, %v806
      %v965 = vsel %vm955, %v948, %v808
      %v966 = vsel %vm955, %v949, %v810
      %v967 = vsel %vm955, %v950, %v812
      %v968 = vsel %vm955, %v951, %v814
      %v969 = vsel %vm955, %v952, %v816
      %v970 = vsel %vm955, %v953, %v818
      %v971 = vsel %vm955, %v954, %v820
      %v972 = vld [vmem:[%s1] sm:$0xff]
      %v973 = vld [vmem:[%s1 + $0x8] sm:$0xff]
      %v974 = vld [vmem:[%s1 + $0x10] sm:$0xff]
      %v975 = vld [vmem:[%s1 + $0x18] sm:$0xff]
      %v976 = vld [vmem:[%s1 + $0x20] sm:$0xf]
      %v977 = vld [vmem:[%s2] sm:$0x1]
      %v979 = vlaneseq
      %v980 = vshrl.u32 %v979, 7
      %v981 = vsub.s32 0, %v980
      %v982 = vrot.slane %v977, %v981
      %vm984 = vcmask 293888
      %v986 = vsel %vm984, %v956, 0
      %v989 = vsel %vm984, %v957, 0
      %v992 = vsel %vm984, %v958, 0
      %v995 = vsel %vm984, %v959, 0
      %v998 = vsel %vm984, %v960, 0
      %v1001 = vsel %vm984, %v961, 0
      %v1004 = vsel %vm984, %v962, 0
      %v1007 = vsel %vm984, %v963, 0
      %v1010 = vsel %vm984, %v964, 0
      %v1013 = vsel %vm984, %v965, 0
      %v1016 = vsel %vm984, %v966, 0
      %v1019 = vsel %vm984, %v967, 0
      %v1022 = vsel %vm984, %v968, 0
      %v1025 = vsel %vm984, %v969, 0
      %v1028 = vsel %vm984, %v970, 0
      %v1031 = vsel %vm984, %v971, 0
      %vm1033 = vcmask 1043456
      %v1035 = vsel %vm1033, %v976, 0
      %1037 = vmatprep.subr.mxu0 0.0
      %1038 = vmatpush1.msra.mxu0 %v972
      %1039 = vmatprep.subr.mxu0 0.0
      %1040 = vmatpush1.msra.mxu0 %v973
      %1041 = vmatprep.subr.mxu0 0.0
      %1042 = vmatpush1.msra.mxu0 %v974
      %1043 = vmatprep.subr.mxu0 0.0
      %1044 = vmatpush1.msra.mxu0 %v975
      %1045 = vmatprep.subr.mxu0 0.0
      %1046 = vmatpush1.msra.mxu0 %v1035
      %1047 = vmatprep.subr.mxu0 0.0
      %1048 = vmatpush1.msra.mxu0 0.0
      %1049 = vmatprep.subr.mxu0 0.0
      %1050 = vmatpush1.msra.mxu0 0.0
      %1051 = vmatprep.subr.mxu0 0.0
      %1052 = vmatpush1.msra.mxu0 0.0
      %1053 = vmatprep.subr.mxu0 0.0
      %1054 = vmatpush1.msra.mxu0 0.0
      %1055 = vmatprep.subr.mxu0 0.0
      %1056 = vmatpush1.msra.mxu0 0.0
      %1057 = vmatprep.subr.mxu0 0.0
      %1058 = vmatpush1.msra.mxu0 0.0
      %1059 = vmatprep.subr.mxu0 0.0
      %1060 = vmatpush1.msra.mxu0 0.0
      %1061 = vmatprep.subr.mxu0 0.0
      %1062 = vmatpush1.msra.mxu0 0.0
      %1063 = vmatprep.subr.mxu0 0.0
      %1064 = vmatpush1.msra.mxu0 0.0
      %1065 = vmatprep.subr.mxu0 0.0
      %1066 = vmatpush1.msra.mxu0 0.0
      %1067 = vmatprep.subr.mxu0 0.0
      %1068 = vmatpush1.msra.mxu0 0.0
      %1069 = vmatprep.subr.mxu0 0.0
      %1070 = vmatpush1.msra.mxu0 0.0
      %1071 = vmatprep.subr.mxu0 0.0
      %1072 = vmatpush1.msra.mxu0 0.0
      %1073 = vmatprep.subr.mxu0 0.0
      %1074 = vmatpush1.msra.mxu0 0.0
      %1075 = vmatprep.subr.mxu0 0.0
      %1076 = vmatpush1.msra.mxu0 0.0
      %1077 = vmatprep.subr.mxu0 0.0
      %1078 = vmatpush1.msra.mxu0 0.0
      %1079 = vmatprep.subr.mxu0 0.0
      %1080 = vmatpush1.msra.mxu0 0.0
      %1081 = vmatprep.subr.mxu0 0.0
      %1082 = vmatpush1.msra.mxu0 0.0
      %1083 = vmatprep.subr.mxu0 0.0
      %1084 = vmatpush1.msra.mxu0 0.0
      %1085 = vmatprep.subr.mxu0 0.0
      %1086 = vmatpush1.msra.mxu0 0.0
      %1087 = vmatprep.subr.mxu0 0.0
      %1088 = vmatpush1.msra.mxu0 0.0
      %1089 = vmatprep.subr.mxu0 0.0
      %1090 = vmatpush1.msra.mxu0 0.0
      %1091 = vmatprep.subr.mxu0 0.0
      %1092 = vmatpush1.msra.mxu0 0.0
      %1093 = vmatprep.subr.mxu0 0.0
      %1094 = vmatpush1.msra.mxu0 0.0
      %1095 = vmatprep.subr.mxu0 0.0
      %1096 = vmatpush1.msra.mxu0 0.0
      %1097 = vmatprep.subr.mxu0 0.0
      %1098 = vmatpush1.msra.mxu0 0.0
      %1099 = vmatprep.subr.mxu0 0.0
      %1100 = vmatpush1.msra.mxu0 0.0
      %1101 = vmatprep.mubr.f32.mxu0 0.0
      %1102 = vmatmul.mubr.f32.gmra.mrb[0].mxu0 %v986
      %v1103 = vpop.f32.mrb[0].mxu0
      %v1104 = vadd.f32 %v982, %v1103
      %v1105 = vpop.f32.mrb[0].mxu0
      %1106 = vmatprep.mubr.f32.mxu0 0.0
      %1107 = vmatmul.mubr.f32.gmra.mrb[0].mxu0 %v989
      %v1108 = vpop.f32.mrb[0].mxu0
      %v1109 = vadd.f32 %v982, %v1108
      %v1110 = vpop.f32.mrb[0].mxu0
      %1111 = vmatprep.mubr.f32.mxu0 0.0
      %1112 = vmatmul.mubr.f32.gmra.mrb[0].mxu0 %v992
      %v1113 = vpop.f32.mrb[0].mxu0
      %v1114 = vadd.f32 %v982, %v1113
      %v1115 = vpop.f32.mrb[0].mxu0
      %1116 = vmatprep.mubr.f32.mxu0 0.0
      %1117 = vmatmul.mubr.f32.gmra.mrb[0].mxu0 %v995
      %v1118 = vpop.f32.mrb[0].mxu0
      %v1119 = vadd.f32 %v982, %v1118
      %v1120 = vpop.f32.mrb[0].mxu0
      %1121 = vmatprep.mubr.f32.mxu0 0.0
      %1122 = vmatmul.mubr.f32.gmra.mrb[0].mxu0 %v998
      %v1123 = vpop.f32.mrb[0].mxu0
      %v1124 = vadd.f32 %v982, %v1123
      %v1125 = vpop.f32.mrb[0].mxu0
      %1126 = vmatprep.mubr.f32.mxu0 0.0
      %1127 = vmatmul.mubr.f32.gmra.mrb[0].mxu0 %v1001
      %v1128 = vpop.f32.mrb[0].mxu0
      %v1129 = vadd.f32 %v982, %v1128
      %v1130 = vpop.f32.mrb[0].mxu0
      %1131 = vmatprep.mubr.f32.mxu0 0.0
      %1132 = vmatmul.mubr.f32.gmra.mrb[0].mxu0 %v1004
      %v1133 = vpop.f32.mrb[0].mxu0
      %v1134 = vadd.f32 %v982, %v1133
      %v1135 = vpop.f32.mrb[0].mxu0
      %1136 = vmatprep.mubr.f32.mxu0 0.0
      %1137 = vmatmul.mubr.f32.gmra.mrb[0].mxu0 %v1007
      %v1138 = vpop.f32.mrb[0].mxu0
      %v1139 = vadd.f32 %v982, %v1138
      %v1140 = vpop.f32.mrb[0].mxu0
      %1141 = vmatprep.mubr.f32.mxu0 0.0
      %1142 = vmatmul.mubr.f32.gmra.mrb[0].mxu0 %v1010
      %v1143 = vpop.f32.mrb[0].mxu0
      %v1144 = vadd.f32 %v982, %v1143
      %v1145 = vpop.f32.mrb[0].mxu0
      %1146 = vmatprep.mubr.f32.mxu0 0.0
      %1147 = vmatmul.mubr.f32.gmra.mrb[0].mxu0 %v1013
      %v1148 = vpop.f32.mrb[0].mxu0
      %v1149 = vadd.f32 %v982, %v1148
      %v1150 = vpop.f32.mrb[0].mxu0
      %1151 = vmatprep.mubr.f32.mxu0 0.0
      %1152 = vmatmul.mubr.f32.gmra.mrb[0].mxu0 %v1016
      %v1153 = vpop.f32.mrb[0].mxu0
      %v1154 = vadd.f32 %v982, %v1153
      %v1155 = vpop.f32.mrb[0].mxu0
      %1156 = vmatprep.mubr.f32.mxu0 0.0
      %1157 = vmatmul.mubr.f32.gmra.mrb[0].mxu0 %v1019
      %v1158 = vpop.f32.mrb[0].mxu0
      %v1159 = vadd.f32 %v982, %v1158
      %v1160 = vpop.f32.mrb[0].mxu0
      %1161 = vmatprep.mubr.f32.mxu0 0.0
      %1162 = vmatmul.mubr.f32.gmra.mrb[0].mxu0 %v1022
      %v1163 = vpop.f32.mrb[0].mxu0
      %v1164 = vadd.f32 %v982, %v1163
      %v1165 = vpop.f32.mrb[0].mxu0
      %1166 = vmatprep.mubr.f32.mxu0 0.0
      %1167 = vmatmul.mubr.f32.gmra.mrb[0].mxu0 %v1025
      %v1168 = vpop.f32.mrb[0].mxu0
      %v1169 = vadd.f32 %v982, %v1168
      %v1170 = vpop.f32.mrb[0].mxu0
      %1171 = vmatprep.mubr.f32.mxu0 0.0
      %1172 = vmatmul.mubr.f32.gmra.mrb[0].mxu0 %v1028
      %v1173 = vpop.f32.mrb[0].mxu0
      %v1174 = vadd.f32 %v982, %v1173
      %v1175 = vpop.f32.mrb[0].mxu0
      %1176 = vmatprep.mubr.f32.mxu0 0.0
      %1177 = vmatmul.mubr.f32.gmra.mrb[0].mxu0 %v1031
      %v1178 = vpop.f32.mrb[0].mxu0
      %v1179 = vadd.f32 %v982, %v1178
      %v1180 = vpop.f32.mrb[0].mxu0
      %1181 = vdwg.mxu0
      %s1182 = scalar_lea.vmem %s1, 40
      %v1183 = vld [vmem:[%s1182] sm:$0xff]
      %v1184 = vld [vmem:[%s1182 + $0x8] sm:$0xff]
      %v1185 = vld [vmem:[%s1182 + $0x10] sm:$0xff]
      %v1186 = vld [vmem:[%s1182 + $0x18] sm:$0xff]
      %v1187 = vld [vmem:[%s1182 + $0x20] sm:$0xf]
      %s1188 = scalar_lea.vmem %s2, 1
      %v1189 = vld [vmem:[%s1188] sm:$0x1]
      %v1191 = vlaneseq
      %v1192 = vshrl.u32 %v1191, 7
      %v1193 = vsub.s32 0, %v1192
      %v1194 = vrot.slane %v1189, %v1193
      %v1197 = vsel %vm1033, %v1187, 0
      %1199 = vmatprep.subr.mxu0 0.0
      %1200 = vmatpush1.msra.mxu0 %v1183
      %1201 = vmatprep.subr.mxu0 0.0
      %1202 = vmatpush1.msra.mxu0 %v1184
      %1203 = vmatprep.subr.mxu0 0.0
      %1204 = vmatpush1.msra.mxu0 %v1185
      %1205 = vmatprep.subr.mxu0 0.0
      %1206 = vmatpush1.msra.mxu0 %v1186
      %1207 = vmatprep.subr.mxu0 0.0
      %1208 = vmatpush1.msra.mxu0 %v1197
      %1209 = vmatprep.subr.mxu0 0.0
      %1210 = vmatpush1.msra.mxu0 0.0
      %1211 = vmatprep.subr.mxu0 0.0
      %1212 = vmatpush1.msra.mxu0 0.0
      %1213 = vmatprep.subr.mxu0 0.0
      %1214 = vmatpush1.msra.mxu0 0.0
      %1215 = vmatprep.subr.mxu0 0.0
      %1216 = vmatpush1.msra.mxu0 0.0
      %1217 = vmatprep.subr.mxu0 0.0
      %1218 = vmatpush1.msra.mxu0 0.0
      %1219 = vmatprep.subr.mxu0 0.0
      %1220 = vmatpush1.msra.mxu0 0.0
      %1221 = vmatprep.subr.mxu0 0.0
      %1222 = vmatpush1.msra.mxu0 0.0
      %1223 = vmatprep.subr.mxu0 0.0
      %1224 = vmatpush1.msra.mxu0 0.0
      %1225 = vmatprep.subr.mxu0 0.0
      %1226 = vmatpush1.msra.mxu0 0.0
      %1227 = vmatprep.subr.mxu0 0.0
      %1228 = vmatpush1.msra.mxu0 0.0
      %1229 = vmatprep.subr.mxu0 0.0
      %1230 = vmatpush1.msra.mxu0 0.0
      %1231 = vmatprep.subr.mxu0 0.0
      %1232 = vmatpush1.msra.mxu0 0.0
      %1233 = vmatprep.subr.mxu0 0.0
      %1234 = vmatpush1.msra.mxu0 0.0
      %1235 = vmatprep.subr.mxu0 0.0
      %1236 = vmatpush1.msra.mxu0 0.0
      %1237 = vmatprep.subr.mxu0 0.0
      %1238 = vmatpush1.msra.mxu0 0.0
      %1239 = vmatprep.subr.mxu0 0.0
      %1240 = vmatpush1.msra.mxu0 0.0
      %1241 = vmatprep.subr.mxu0 0.0
      %1242 = vmatpush1.msra.mxu0 0.0
      %1243 = vmatprep.subr.mxu0 0.0
      %1244 = vmatpush1.msra.mxu0 0.0
      %1245 = vmatprep.subr.mxu0 0.0
      %1246 = vmatpush1.msra.mxu0 0.0
      %1247 = vmatprep.subr.mxu0 0.0
      %1248 = vmatpush1.msra.mxu0 0.0
      %1249 = vmatprep.subr.mxu0 0.0
      %1250 = vmatpush1.msra.mxu0 0.0
      %1251 = vmatprep.subr.mxu0 0.0
      %1252 = vmatpush1.msra.mxu0 0.0
      %1253 = vmatprep.subr.mxu0 0.0
      %1254 = vmatpush1.msra.mxu0 0.0
      %1255 = vmatprep.subr.mxu0 0.0
      %1256 = vmatpush1.msra.mxu0 0.0
      %1257 = vmatprep.subr.mxu0 0.0
      %1258 = vmatpush1.msra.mxu0 0.0
      %1259 = vmatprep.subr.mxu0 0.0
      %1260 = vmatpush1.msra.mxu0 0.0
      %1261 = vmatprep.subr.mxu0 0.0
      %1262 = vmatpush1.msra.mxu0 0.0
      %1263 = vmatprep.mubr.f32.mxu0 0.0
      %1264 = vmatmul.mubr.f32.gmra.mrb[0].mxu0 %v986
      %v1265 = vpop.f32.mrb[0].mxu0
      %v1266 = vadd.f32 %v1194, %v1265
      %v1267 = vpop.f32.mrb[0].mxu0
      %1268 = vmatprep.mubr.f32.mxu0 0.0
      %1269 = vmatmul.mubr.f32.gmra.mrb[0].mxu0 %v989
      %v1270 = vpop.f32.mrb[0].mxu0
      %v1271 = vadd.f32 %v1194, %v1270
      %v1272 = vpop.f32.mrb[0].mxu0
      %1273 = vmatprep.mubr.f32.mxu0 0.0
      %1274 = vmatmul.mubr.f32.gmra.mrb[0].mxu0 %v992
      %v1275 = vpop.f32.mrb[0].mxu0
      %v1276 = vadd.f32 %v1194, %v1275
      %v1277 = vpop.f32.mrb[0].mxu0
      %1278 = vmatprep.mubr.f32.mxu0 0.0
      %1279 = vmatmul.mubr.f32.gmra.mrb[0].mxu0 %v995
      %v1280 = vpop.f32.mrb[0].mxu0
      %v1281 = vadd.f32 %v1194, %v1280
      %v1282 = vpop.f32.mrb[0].mxu0
      %1283 = vmatprep.mubr.f32.mxu0 0.0
      %1284 = vmatmul.mubr.f32.gmra.mrb[0].mxu0 %v998
      %v1285 = vpop.f32.mrb[0].mxu0
      %v1286 = vadd.f32 %v1194, %v1285
      %v1287 = vpop.f32.mrb[0].mxu0
      %1288 = vmatprep.mubr.f32.mxu0 0.0
      %1289 = vmatmul.mubr.f32.gmra.mrb[0].mxu0 %v1001
      %v1290 = vpop.f32.mrb[0].mxu0
      %v1291 = vadd.f32 %v1194, %v1290
      %v1292 = vpop.f32.mrb[0].mxu0
      %1293 = vmatprep.mubr.f32.mxu0 0.0
      %1294 = vmatmul.mubr.f32.gmra.mrb[0].mxu0 %v1004
      %v1295 = vpop.f32.mrb[0].mxu0
      %v1296 = vadd.f32 %v1194, %v1295
      %v1297 = vpop.f32.mrb[0].mxu0
      %1298 = vmatprep.mubr.f32.mxu0 0.0
      %1299 = vmatmul.mubr.f32.gmra.mrb[0].mxu0 %v1007
      %v1300 = vpop.f32.mrb[0].mxu0
      %v1301 = vadd.f32 %v1194, %v1300
      %v1302 = vpop.f32.mrb[0].mxu0
      %1303 = vmatprep.mubr.f32.mxu0 0.0
      %1304 = vmatmul.mubr.f32.gmra.mrb[0].mxu0 %v1010
      %v1305 = vpop.f32.mrb[0].mxu0
      %v1306 = vadd.f32 %v1194, %v1305
      %v1307 = vpop.f32.mrb[0].mxu0
      %1308 = vmatprep.mubr.f32.mxu0 0.0
      %1309 = vmatmul.mubr.f32.gmra.mrb[0].mxu0 %v1013
      %v1310 = vpop.f32.mrb[0].mxu0
      %v1311 = vadd.f32 %v1194, %v1310
      %v1312 = vpop.f32.mrb[0].mxu0
      %1313 = vmatprep.mubr.f32.mxu0 0.0
      %1314 = vmatmul.mubr.f32.gmra.mrb[0].mxu0 %v1016
      %v1315 = vpop.f32.mrb[0].mxu0
      %v1316 = vadd.f32 %v1194, %v1315
      %v1317 = vpop.f32.mrb[0].mxu0
      %1318 = vmatprep.mubr.f32.mxu0 0.0
      %1319 = vmatmul.mubr.f32.gmra.mrb[0].mxu0 %v1019
      %v1320 = vpop.f32.mrb[0].mxu0
      %v1321 = vadd.f32 %v1194, %v1320
      %v1322 = vpop.f32.mrb[0].mxu0
      %1323 = vmatprep.mubr.f32.mxu0 0.0
      %1324 = vmatmul.mubr.f32.gmra.mrb[0].mxu0 %v1022
      %v1325 = vpop.f32.mrb[0].mxu0
      %v1326 = vadd.f32 %v1194, %v1325
      %v1327 = vpop.f32.mrb[0].mxu0
      %1328 = vmatprep.mubr.f32.mxu0 0.0
      %1329 = vmatmul.mubr.f32.gmra.mrb[0].mxu0 %v1025
      %v1330 = vpop.f32.mrb[0].mxu0
      %v1331 = vadd.f32 %v1194, %v1330
      %v1332 = vpop.f32.mrb[0].mxu0
      %1333 = vmatprep.mubr.f32.mxu0 0.0
      %1334 = vmatmul.mubr.f32.gmra.mrb[0].mxu0 %v1028
      %v1335 = vpop.f32.mrb[0].mxu0
      %v1336 = vadd.f32 %v1194, %v1335
      %v1337 = vpop.f32.mrb[0].mxu0
      %1338 = vmatprep.mubr.f32.mxu0 0.0
      %1339 = vmatmul.mubr.f32.gmra.mrb[0].mxu0 %v1031
      %v1340 = vpop.f32.mrb[0].mxu0
      %v1341 = vadd.f32 %v1194, %v1340
      %v1342 = vpop.f32.mrb[0].mxu0
      %1343 = vdwg.mxu0
      %1344 = vst.msk [vmem:[%s194] sm:$0xff] %vm853, %v1104
      %1345 = vst.msk [vmem:[%s194 + $0x8] sm:$0xff] %vm853, %v1109
      %1346 = vst.msk [vmem:[%s194 + $0x20] sm:$0xff] %vm853, %v1114
      %1347 = vst.msk [vmem:[%s194 + $0x28] sm:$0xff] %vm853, %v1119
      %1348 = vst.msk [vmem:[%s194 + $0x40] sm:$0xff] %vm853, %v1124
      %1349 = vst.msk [vmem:[%s194 + $0x48] sm:$0xff] %vm853, %v1129
      %1350 = vst.msk [vmem:[%s194 + $0x60] sm:$0xff] %vm853, %v1134
      %1351 = vst.msk [vmem:[%s194 + $0x68] sm:$0xff] %vm853, %v1139
      %1352 = vst.msk [vmem:[%s194 + $0x80] sm:$0xff] %vm853, %v1144
      %1353 = vst.msk [vmem:[%s194 + $0x88] sm:$0xff] %vm853, %v1149
      %1354 = vst.msk [vmem:[%s194 + $0xa0] sm:$0xff] %vm853, %v1154
      %1355 = vst.msk [vmem:[%s194 + $0xa8] sm:$0xff] %vm853, %v1159
      %1356 = vst.msk [vmem:[%s194 + $0xc0] sm:$0xff] %vm853, %v1164
      %1357 = vst.msk [vmem:[%s194 + $0xc8] sm:$0xff] %vm853, %v1169
      %1358 = vst.msk [vmem:[%s194 + $0xe0] sm:$0xff] %vm853, %v1174
      %1359 = vst.msk [vmem:[%s194 + $0xe8] sm:$0xff] %vm853, %v1179
      %s1360 = scalar_lea.vmem %s194, 16
      %1361 = vst.msk [vmem:[%s1360] sm:$0xff] %vm853, %v1266
      %1362 = vst.msk [vmem:[%s1360 + $0x8] sm:$0xff] %vm853, %v1271
      %1363 = vst.msk [vmem:[%s1360 + $0x20] sm:$0xff] %vm853, %v1276
      %1364 = vst.msk [vmem:[%s1360 + $0x28] sm:$0xff] %vm853, %v1281
      %1365 = vst.msk [vmem:[%s1360 + $0x40] sm:$0xff] %vm853, %v1286
      %1366 = vst.msk [vmem:[%s1360 + $0x48] sm:$0xff] %vm853, %v1291
      %1367 = vst.msk [vmem:[%s1360 + $0x60] sm:$0xff] %vm853, %v1296
      %1368 = vst.msk [vmem:[%s1360 + $0x68] sm:$0xff] %vm853, %v1301
      %1369 = vst.msk [vmem:[%s1360 + $0x80] sm:$0xff] %vm853, %v1306
      %1370 = vst.msk [vmem:[%s1360 + $0x88] sm:$0xff] %vm853, %v1311
      %1371 = vst.msk [vmem:[%s1360 + $0xa0] sm:$0xff] %vm853, %v1316
      %1372 = vst.msk [vmem:[%s1360 + $0xa8] sm:$0xff] %vm853, %v1321
      %1373 = vst.msk [vmem:[%s1360 + $0xc0] sm:$0xff] %vm853, %v1326
      %1374 = vst.msk [vmem:[%s1360 + $0xc8] sm:$0xff] %vm853, %v1331
      %1375 = vst.msk [vmem:[%s1360 + $0xe0] sm:$0xff] %vm853, %v1336
      %1376 = vst.msk [vmem:[%s1360 + $0xe8] sm:$0xff] %vm853, %v1341
      %s1377 = smul.u32 8, %s19
      %p1378 = scmp.lt.s32.totalorder %s18, 1
      %s1379 = scalar_select %p1378, %s18, 1
      %p1380 = scmp.lt.s32.totalorder %s1377, 15
      %s1381 = scalar_select %p1380, %s1377, 15
      %s1382 = smul.addr %s1381, 4
      %s1383 = smul.addr %s1379, 64
      %s1384 = sadd.s32 %s1382, %s1383
      %s1385 = smul.addr %s1384, 8
      %s1386 = scalar_lea.vmem %s3, %s1385
      // Predicated region
      $region49: #{tpu_custom_call.1} parent=31 // pred_check
        %p1387 = pneg %p114
      $region50: #{tpu_custom_call.1} parent=31 // pred_check_branch
        %1389 = sbr.rel (%p1387) target = $region52
      $region51: #{tpu_custom_call.1} parent=31 // pred_region
        %s1390 = smul.u32 8, %s19
      $region52: #{tpu_custom_call.1} parent=31 // pred_fallthru
        _
    $region32: #{tpu_custom_call.1} parent=5 // pred_fallthru
      _
    %p1391 = scmp.le.s32.totalorder 2, %s9
    // Predicated region
    $region53: #{tpu_custom_call.1} parent=5 // pred_check
      %p1392 = pneg %p1391
    $region54: #{tpu_custom_call.1} parent=5 // pred_check_branch
      %1394 = sbr.rel (%p1392) target = $region56
    $region55: #{tpu_custom_call.1} parent=5 // pred_region
      %s1395 = ssub.s32 %s9, 2
      // Predicated region
      $region57: #{tpu_custom_call.1} parent=55 // pred_check
        %p1396 = pneg %p120
      $region58: #{tpu_custom_call.1} parent=55 // pred_check_branch
        %1398 = sbr.rel (%p1396) target = $region60
      $region59: #{tpu_custom_call.1} parent=55 // pred_region
        %s1399 = smul.u32 8, %s21
        %p1400 = scmp.lt.s32.totalorder %s20, 1
        %s1401 = scalar_select %p1400, %s20, 1
        %p1402 = scmp.lt.s32.totalorder %s1399, 15
        %s1403 = scalar_select %p1402, %s1399, 15
        %s1404 = smul.addr %s1403, 4
        %s1405 = smul.addr %s1401, 64
        %s1406 = sadd.s32 %s1404, %s1405
        %s1407 = smul.addr %s1406, 8
        %s1408 = scalar_lea.vmem %s3, %s1407
      $region60: #{tpu_custom_call.1} parent=55 // pred_fallthru
        _
    $region56: #{tpu_custom_call.1} parent=5 // pred_fallthru
      _
  $region6: #{tpu_custom_call.1} parent=0 // loop_footer
    %s13 = sadd.s32 1, %s9
  $region7: #{tpu_custom_call.1} parent=0 // loop_footer_branch
    %8 = sbr.rel target = $region3
  $region8: #{tpu_custom_call.1} parent=0 // loop_exit
    _

</llo_original>
